<compile_context>
chip_gen: v5e
topology: v5e:2x2
jax: 0.10.0
libtpu: 0.0.40
codegen_flags: <defaults>
</compile_context>

<pallas_src>
import functools
import math

import jax
import jax.numpy as jnp
from jax.experimental import pallas as pl
from jax.experimental.pallas import tpu as pltpu

_HIGH = jax.lax.Precision.HIGHEST   # only used by the plain-JAX reference


def _mha_kernel(bias_ref, q_ref, k_ref, v_ref, wq_ref, wk_ref, wv_ref, wo_ref,
                res_ref, attn_ref, vt_scr, *, n_heads, d_k, d_v, inv_sqrt_dk, eps):
    # One batch element per grid step.
    x_q = q_ref[0]          # [Lq, D]  f32 (kept f32 for the residual / layernorm)
    x_k = k_ref[0]          # [Lk, D]  f32
    x_v = v_ref[0]          # [Lv, D]  f32
    bias = bias_ref[0]      # [Lq, Lk] f32 additive mask bias (-1e9 == masked)

    lv = x_v.shape[0]
    bf16 = jnp.bfloat16

    # Projections: bf16 inputs, f32 accumulation on the MXU.
    q_proj = jnp.dot(x_q.astype(bf16), wq_ref[...], preferred_element_type=jnp.float32)
    k_proj = jnp.dot(x_k.astype(bf16), wk_ref[...], preferred_element_type=jnp.float32)
    v_proj = jnp.dot(x_v.astype(bf16), wv_ref[...], preferred_element_type=jnp.float32)

    # Re-lay the projected V into a head-major scratch: row kk*Lv + pos holds
    # v_proj[pos, kk*d_v:(kk+1)*d_v].  Head h's value matrix (the reference's
    # buggy "row h of V viewed as [len_k, d_v]") is then a stride-Lv sublane
    # slice, which feeds one MXU matmul per head instead of an unrolled
    # broadcast/multiply loop.
    for kk in range(n_heads):
        vt_scr[pl.ds(kk * lv, lv), :] = v_proj[:, kk * d_v:(kk + 1) * d_v]

    q_bf = q_proj.astype(bf16)
    k_bf = k_proj.astype(bf16)

    p_heads = []
    ctx_heads = []
    for h in range(n_heads):
        q_h = q_bf[:, h * d_k:(h + 1) * d_k]                       # [Lq, dk] bf16
        k_h = k_bf[:, h * d_k:(h + 1) * d_k]                       # [Lk, dk] bf16
        # q_h @ k_h.T without materializing a transpose (NT matmul on the MXU).
        scores = jax.lax.dot_general(q_h, k_h, (((1,), (1,)), ((), ())),
                                     preferred_element_type=jnp.float32)
        scores = scores * inv_sqrt_dk + bias                       # mask folded in
        m = jnp.max(scores, axis=-1, keepdims=True)
        e = jnp.exp(scores - m)
        denom = jnp.sum(e, axis=-1, keepdims=True)
        p = e * pl.reciprocal(denom, approx=True)                  # EUP divide
        p_heads.append(p)

        # Value matrix for head h: rows h, h+Lv, ..., h+(n_heads-1)*Lv.
        v_mat = vt_scr[pl.ds(h, n_heads, stride=lv), :]            # [len_k(=H), d_v] f32
        ctx_heads.append(jnp.dot(p.astype(bf16), v_mat.astype(bf16),
                                 preferred_element_type=jnp.float32))

    # Lane-dense single store of all heads' attention probabilities: [Lq, H*Lk].
    attn_ref[0] = jnp.concatenate(p_heads, axis=-1)

    # Single fused output projection (K = H*d_v) instead of H small matmuls.
    ctx = jnp.concatenate(ctx_heads, axis=-1)                      # [Lq, H*dv] f32
    out = jnp.dot(ctx.astype(bf16), wo_ref[...], preferred_element_type=jnp.float32)

    # Residual + LayerNorm(elementwise_affine=False), eps = 1e-5, all in f32.
    y = out + x_q
    mean = jnp.mean(y, axis=-1, keepdims=True)
    var = jnp.mean((y - mean) ** 2, axis=-1, keepdims=True)
    res_ref[0] = (y - mean) * jax.lax.rsqrt(var + eps)


def multi_head_attention(input_Q, input_K, input_V, attn_mask,
                         w_q, w_k, w_v, w_o, *, n_heads, d_k, d_v):
    B, Lq, D = input_Q.shape
    Lk = input_K.shape[1]
    Lv = input_V.shape[1]
    # Faithful to the reference's transpose(V,1,1) bug: requires len_k == n_heads.
    assert Lk == n_heads and Lv == Lk, "reference semantics need seq_len == n_heads"

    # Additive mask bias precomputed in the wrapper (no in-kernel compare, and no
    # per-head re-selection since the head loop is fully unrolled).
    bias = jnp.where(attn_mask, jnp.float32(-1e9), jnp.float32(0.0))

    # Weights live in HBM as bf16 (halves weight DMA); MXU accumulates in f32.
    wq_b = w_q.astype(jnp.bfloat16)
    wk_b = w_k.astype(jnp.bfloat16)
    wv_b = w_v.astype(jnp.bfloat16)
    wo_b = w_o.astype(jnp.bfloat16)

    kernel = functools.partial(_mha_kernel, n_heads=n_heads, d_k=d_k, d_v=d_v,
                               inv_sqrt_dk=1.0 / math.sqrt(d_k), eps=1e-5)

    grid_spec = pltpu.PrefetchScalarGridSpec(
        num_scalar_prefetch=0,
        grid=(B,),
        in_specs=[
            pl.BlockSpec((1, Lq, Lk), lambda b: (b, 0, 0)),        # additive mask bias
            pl.BlockSpec((1, Lq, D), lambda b: (b, 0, 0)),         # input_Q
            pl.BlockSpec((1, Lk, D), lambda b: (b, 0, 0)),         # input_K
            pl.BlockSpec((1, Lv, D), lambda b: (b, 0, 0)),         # input_V
            pl.BlockSpec((D, n_heads * d_k), lambda b: (0, 0)),    # W_Q^T (bf16)
            pl.BlockSpec((D, n_heads * d_k), lambda b: (0, 0)),    # W_K^T (bf16)
            pl.BlockSpec((D, n_heads * d_v), lambda b: (0, 0)),    # W_V^T (bf16)
            pl.BlockSpec((n_heads * d_v, D), lambda b: (0, 0)),    # fc^T  (bf16)
        ],
        out_specs=[
            pl.BlockSpec((1, Lq, D), lambda b: (b, 0, 0)),             # res
            pl.BlockSpec((1, Lq, n_heads * Lk), lambda b: (b, 0, 0)),  # attn (lane-dense)
        ],
        scratch_shapes=[pltpu.VMEM((Lv * n_heads, d_v), jnp.float32)],  # head-major V
    )

    res, attn_flat = pl.pallas_call(
        kernel,
        out_shape=(
            jax.ShapeDtypeStruct((B, Lq, D), jnp.float32),
            jax.ShapeDtypeStruct((B, Lq, n_heads * Lk), jnp.float32),
        ),
        grid_spec=grid_spec,
        compiler_params=pltpu.CompilerParams(dimension_semantics=("parallel",)),
    )(bias, input_Q, input_K, input_V, wq_b, wk_b, wv_b, wo_b)

    # Kernel stores attn as [B, Lq, H*Lk] (lane-dense); present it as [B, H, Lq, Lk].
    attn = attn_flat.reshape(B, Lq, n_heads, Lk).transpose(0, 2, 1, 3)
    return res, attn


def reference_mha(input_Q, input_K, input_V, attn_mask,
                  w_q, w_k, w_v, w_o, *, n_heads, d_k, d_v):
    """Plain-JAX f32 transliteration of the PyTorch forward (for validation)."""
    B, Lq, _ = input_Q.shape
    Lk = input_K.shape[1]
    Lv = input_V.shape[1]
    Q = (input_Q @ w_q).reshape(B, Lq, n_heads, d_k).transpose(0, 2, 1, 3)
    K = (input_K @ w_k).reshape(B, Lk, n_heads, d_k).transpose(0, 2, 1, 3)
    V = (input_V @ w_v).reshape(B, Lv, n_heads, d_v)      # transpose(V,1,1) is a no-op
    QK = jnp.matmul(Q, jnp.swapaxes(K, 2, 3), precision=_HIGH) / math.sqrt(d_k)
    mask = jnp.broadcast_to(attn_mask[:, None], (B, n_heads, Lq, Lk))
    QK = jnp.where(mask, jnp.float32(-1e9), QK)
    P = jax.nn.softmax(QK, axis=3)
    QKV = jnp.matmul(P, V, precision=_HIGH)               # broadcasts (B,H) vs (B,Lv)
    ctx = jnp.swapaxes(QKV, 1, 2).reshape(B, Lq, n_heads * d_v)
    result = jnp.matmul(ctx, w_o, precision=_HIGH)
    y = result + input_Q
    mean = jnp.mean(y, axis=-1, keepdims=True)
    var = jnp.mean((y - mean) ** 2, axis=-1, keepdims=True)
    res = (y - mean) / jnp.sqrt(var + 1e-5)
    return res, P


if __name__ == "__main__":
    d_model, d_k, d_v, n_heads = 32, 8, 8, 8
    batch, seq_len = 2, 8     # seq_len must equal n_heads (see NOTE at top)

    key = jax.random.PRNGKey(0)
    k1, k2, k3, k4, k5, k6, k7 = jax.random.split(key, 7)
    scale = 1.0 / math.sqrt(d_model)
    w_q = jax.random.normal(k1, (d_model, n_heads * d_k), jnp.float32) * scale
    w_k = jax.random.normal(k2, (d_model, n_heads * d_k), jnp.float32) * scale
    w_v = jax.random.normal(k3, (d_model, n_heads * d_v), jnp.float32) * scale
    w_o = jax.random.normal(k4, (n_heads * d_v, d_model), jnp.float32) * scale

    input_Q = jax.random.normal(k5, (batch, seq_len, d_model), jnp.float32)
    input_K = jax.random.normal(k6, (batch, seq_len, d_model), jnp.float32)
    input_V = jax.random.normal(k7, (batch, seq_len, d_model), jnp.float32)
    # causal mask: True == masked (future positions)
    causal = jnp.triu(jnp.ones((seq_len, seq_len), dtype=bool), k=1)
    attn_mask = jnp.broadcast_to(causal[None], (batch, seq_len, seq_len))

    res, attn = multi_head_attention(input_Q, input_K, input_V, attn_mask,
                                     w_q, w_k, w_v, w_o,
                                     n_heads=n_heads, d_k=d_k, d_v=d_v)
    jax.block_until_ready((res, attn))

    res_ref, attn_ref = reference_mha(input_Q, input_K, input_V, attn_mask,
                                      w_q, w_k, w_v, w_o,
                                      n_heads=n_heads, d_k=d_k, d_v=d_v)
    assert res.shape == (batch, seq_len, d_model)
    assert attn.shape == (batch, n_heads, seq_len, seq_len)
    # Tolerances budget for bf16 MXU inputs (f32 accumulation) vs the f32 reference.
    assert jnp.allclose(attn, attn_ref, atol=3e-2, rtol=3e-2), "attn mismatch vs reference"
    assert jnp.allclose(res, res_ref, atol=8e-2, rtol=8e-2), "res mismatch vs reference"

    print("KERNEL_OK")
</pallas_src>

<mosaic_0001>
module attributes {stable_mosaic.version = 11 : i64} {
  func.func @_mha_kernel(%arg0: i32, %arg1: memref<1x8x8xf32, #tpu.memory_space<vmem>>, %arg2: memref<1x8x32xf32, #tpu.memory_space<vmem>>, %arg3: memref<1x8x32xf32, #tpu.memory_space<vmem>>, %arg4: memref<1x8x32xf32, #tpu.memory_space<vmem>>, %arg5: memref<32x64xbf16, #tpu.memory_space<vmem>>, %arg6: memref<32x64xbf16, #tpu.memory_space<vmem>>, %arg7: memref<32x64xbf16, #tpu.memory_space<vmem>>, %arg8: memref<64x32xbf16, #tpu.memory_space<vmem>>, %arg9: memref<1x8x32xf32, #tpu.memory_space<vmem>>, %arg10: memref<1x8x64xf32, #tpu.memory_space<vmem>>, %arg11: memref<64x8xf32, #tpu.memory_space<vmem>>) attributes {dimension_semantics = [#tpu.dimension_semantics<parallel>], iteration_bounds = array<i64: 2>, scalar_prefetch = 0 : i64, scratch_operands = 1 : i64, tpu.core_type = #tpu.core_type<tc>, window_params = [{transform_indices = @transform_0, window_bounds = array<i64: 1, 8, 8>}, {transform_indices = @transform_1, window_bounds = array<i64: 1, 8, 32>}, {transform_indices = @transform_2, window_bounds = array<i64: 1, 8, 32>}, {transform_indices = @transform_3, window_bounds = array<i64: 1, 8, 32>}, {pipeline_mode = #tpu.pipeline_mode<synchronous>, transform_indices = @transform_4, window_bounds = array<i64: 32, 64>}, {pipeline_mode = #tpu.pipeline_mode<synchronous>, transform_indices = @transform_5, window_bounds = array<i64: 32, 64>}, {pipeline_mode = #tpu.pipeline_mode<synchronous>, transform_indices = @transform_6, window_bounds = array<i64: 32, 64>}, {pipeline_mode = #tpu.pipeline_mode<synchronous>, transform_indices = @transform_7, window_bounds = array<i64: 64, 32>}, {transform_indices = @transform_8, window_bounds = array<i64: 1, 8, 32>}, {transform_indices = @transform_9, window_bounds = array<i64: 1, 8, 64>}]} {
    %c0 = arith.constant 0 : index
    %c0_0 = arith.constant 0 : index
    %c0_1 = arith.constant 0 : index
    %0 = vector.load %arg2[%c0, %c0_0, %c0_1] : memref<1x8x32xf32, #tpu.memory_space<vmem>>, vector<1x8x32xf32>
    %1 = vector.shape_cast %0 : vector<1x8x32xf32> to vector<8x32xf32>
    %c0_2 = arith.constant 0 : index
    %c0_3 = arith.constant 0 : index
    %c0_4 = arith.constant 0 : index
    %2 = vector.load %arg3[%c0_2, %c0_3, %c0_4] : memref<1x8x32xf32, #tpu.memory_space<vmem>>, vector<1x8x32xf32>
    %3 = vector.shape_cast %2 : vector<1x8x32xf32> to vector<8x32xf32>
    %c0_5 = arith.constant 0 : index
    %c0_6 = arith.constant 0 : index
    %c0_7 = arith.constant 0 : index
    %4 = vector.load %arg4[%c0_5, %c0_6, %c0_7] : memref<1x8x32xf32, #tpu.memory_space<vmem>>, vector<1x8x32xf32>
    %5 = vector.shape_cast %4 : vector<1x8x32xf32> to vector<8x32xf32>
    %c0_8 = arith.constant 0 : index
    %c0_9 = arith.constant 0 : index
    %c0_10 = arith.constant 0 : index
    %6 = vector.load %arg1[%c0_8, %c0_9, %c0_10] : memref<1x8x8xf32, #tpu.memory_space<vmem>>, vector<1x8x8xf32>
    %7 = vector.shape_cast %6 : vector<1x8x8xf32> to vector<8x8xf32>
    %8 = arith.truncf %1 : vector<8x32xf32> to vector<8x32xbf16>
    %c0_11 = arith.constant 0 : index
    %c0_12 = arith.constant 0 : index
    %9 = vector.load %arg5[%c0_11, %c0_12] : memref<32x64xbf16, #tpu.memory_space<vmem>>, vector<32x64xbf16>
    %cst = arith.constant dense<0.000000e+00> : vector<8x64xf32>
    %10 = tpu.matmul %8, %9, %cst {dimension_numbers = #tpu.dot_dimension_numbers<[1], [0], [0], [1], [0, 0, 1, 1], [], []>} : vector<8x32xbf16>, vector<32x64xbf16>, vector<8x64xf32> -> vector<8x64xf32>
    %11 = arith.truncf %3 : vector<8x32xf32> to vector<8x32xbf16>
    %c0_13 = arith.constant 0 : index
    %c0_14 = arith.constant 0 : index
    %12 = vector.load %arg6[%c0_13, %c0_14] : memref<32x64xbf16, #tpu.memory_space<vmem>>, vector<32x64xbf16>
    %cst_15 = arith.constant dense<0.000000e+00> : vector<8x64xf32>
    %13 = tpu.matmul %11, %12, %cst_15 {dimension_numbers = #tpu.dot_dimension_numbers<[1], [0], [0], [1], [0, 0, 1, 1], [], []>} : vector<8x32xbf16>, vector<32x64xbf16>, vector<8x64xf32> -> vector<8x64xf32>
    %14 = arith.truncf %5 : vector<8x32xf32> to vector<8x32xbf16>
    %c0_16 = arith.constant 0 : index
    %c0_17 = arith.constant 0 : index
    %15 = vector.load %arg7[%c0_16, %c0_17] : memref<32x64xbf16, #tpu.memory_space<vmem>>, vector<32x64xbf16>
    %cst_18 = arith.constant dense<0.000000e+00> : vector<8x64xf32>
    %16 = tpu.matmul %14, %15, %cst_18 {dimension_numbers = #tpu.dot_dimension_numbers<[1], [0], [0], [1], [0, 0, 1, 1], [], []>} : vector<8x32xbf16>, vector<32x64xbf16>, vector<8x64xf32> -> vector<8x64xf32>
    %17 = vector.extract_strided_slice %16 {offsets = [0, 0], sizes = [8, 8], strides = [1, 1]} : vector<8x64xf32> to vector<8x8xf32>
    %c0_19 = arith.constant 0 : index
    %c0_20 = arith.constant 0 : index
    %18 = vector.load %arg11[%c0_19, %c0_20] : memref<64x8xf32, #tpu.memory_space<vmem>>, vector<8x8xf32>
    tpu.vector_store %arg11[%c0_19, %c0_20], %17 {strides = array<i32>} : memref<64x8xf32, #tpu.memory_space<vmem>>, vector<8x8xf32>,
    %19 = vector.extract_strided_slice %16 {offsets = [0, 8], sizes = [8, 8], strides = [1, 1]} : vector<8x64xf32> to vector<8x8xf32>
    %c8 = arith.constant 8 : index
    %c0_21 = arith.constant 0 : index
    %20 = vector.load %arg11[%c8, %c0_21] : memref<64x8xf32, #tpu.memory_space<vmem>>, vector<8x8xf32>
    tpu.vector_store %arg11[%c8, %c0_21], %19 {strides = array<i32>} : memref<64x8xf32, #tpu.memory_space<vmem>>, vector<8x8xf32>,
    %21 = vector.extract_strided_slice %16 {offsets = [0, 16], sizes = [8, 8], strides = [1, 1]} : vector<8x64xf32> to vector<8x8xf32>
    %c16 = arith.constant 16 : index
    %c0_22 = arith.constant 0 : index
    %22 = vector.load %arg11[%c16, %c0_22] : memref<64x8xf32, #tpu.memory_space<vmem>>, vector<8x8xf32>
    tpu.vector_store %arg11[%c16, %c0_22], %21 {strides = array<i32>} : memref<64x8xf32, #tpu.memory_space<vmem>>, vector<8x8xf32>,
    %23 = vector.extract_strided_slice %16 {offsets = [0, 24], sizes = [8, 8], strides = [1, 1]} : vector<8x64xf32> to vector<8x8xf32>
    %c24 = arith.constant 24 : index
    %c0_23 = arith.constant 0 : index
    %24 = vector.load %arg11[%c24, %c0_23] : memref<64x8xf32, #tpu.memory_space<vmem>>, vector<8x8xf32>
    tpu.vector_store %arg11[%c24, %c0_23], %23 {strides = array<i32>} : memref<64x8xf32, #tpu.memory_space<vmem>>, vector<8x8xf32>,
    %25 = vector.extract_strided_slice %16 {offsets = [0, 32], sizes = [8, 8], strides = [1, 1]} : vector<8x64xf32> to vector<8x8xf32>
    %c32 = arith.constant 32 : index
    %c0_24 = arith.constant 0 : index
    %26 = vector.load %arg11[%c32, %c0_24] : memref<64x8xf32, #tpu.memory_space<vmem>>, vector<8x8xf32>
    tpu.vector_store %arg11[%c32, %c0_24], %25 {strides = array<i32>} : memref<64x8xf32, #tpu.memory_space<vmem>>, vector<8x8xf32>,
    %27 = vector.extract_strided_slice %16 {offsets = [0, 40], sizes = [8, 8], strides = [1, 1]} : vector<8x64xf32> to vector<8x8xf32>
    %c40 = arith.constant 40 : index
    %c0_25 = arith.constant 0 : index
    %28 = vector.load %arg11[%c40, %c0_25] : memref<64x8xf32, #tpu.memory_space<vmem>>, vector<8x8xf32>
    tpu.vector_store %arg11[%c40, %c0_25], %27 {strides = array<i32>} : memref<64x8xf32, #tpu.memory_space<vmem>>, vector<8x8xf32>,
    %29 = vector.extract_strided_slice %16 {offsets = [0, 48], sizes = [8, 8], strides = [1, 1]} : vector<8x64xf32> to vector<8x8xf32>
    %c48 = arith.constant 48 : index
    %c0_26 = arith.constant 0 : index
    %30 = vector.load %arg11[%c48, %c0_26] : memref<64x8xf32, #tpu.memory_space<vmem>>, vector<8x8xf32>
    tpu.vector_store %arg11[%c48, %c0_26], %29 {strides = array<i32>} : memref<64x8xf32, #tpu.memory_space<vmem>>, vector<8x8xf32>,
    %31 = vector.extract_strided_slice %16 {offsets = [0, 56], sizes = [8, 8], strides = [1, 1]} : vector<8x64xf32> to vector<8x8xf32>
    %c56 = arith.constant 56 : index
    %c0_27 = arith.constant 0 : index
    %32 = vector.load %arg11[%c56, %c0_27] : memref<64x8xf32, #tpu.memory_space<vmem>>, vector<8x8xf32>
    tpu.vector_store %arg11[%c56, %c0_27], %31 {strides = array<i32>} : memref<64x8xf32, #tpu.memory_space<vmem>>, vector<8x8xf32>,
    %33 = arith.truncf %10 : vector<8x64xf32> to vector<8x64xbf16>
    %34 = arith.truncf %13 : vector<8x64xf32> to vector<8x64xbf16>
    %35 = vector.extract_strided_slice %33 {offsets = [0, 0], sizes = [8, 8], strides = [1, 1]} : vector<8x64xbf16> to vector<8x8xbf16>
    %36 = vector.extract_strided_slice %34 {offsets = [0, 0], sizes = [8, 8], strides = [1, 1]} : vector<8x64xbf16> to vector<8x8xbf16>
    %cst_28 = arith.constant dense<0.000000e+00> : vector<8x8xf32>
    %37 = tpu.matmul %35, %36, %cst_28 {dimension_numbers = #tpu.dot_dimension_numbers<[1], [1], [0], [0], [0, 0, 1, 0], [], []>} : vector<8x8xbf16>, vector<8x8xbf16>, vector<8x8xf32> -> vector<8x8xf32>
    %cst_29 = arith.constant 0.353553385 : f32
    %38 = vector.broadcast %cst_29 : f32 to vector<8x8xf32>
    %39 = arith.mulf %37, %38 : vector<8x8xf32>
    %40 = arith.addf %39, %7 : vector<8x8xf32>
    %cst_30 = arith.constant dense<0xFF800000> : vector<8xf32>
    %41 = vector.multi_reduction <maximumf>, %40, %cst_30 [1] : vector<8x8xf32> to vector<8xf32>
    %42 = vector.shape_cast %41 : vector<8xf32> to vector<8x1xf32>
    %43 = vector.broadcast %42 : vector<8x1xf32> to vector<8x8xf32>
    %44 = arith.subf %40, %43 : vector<8x8xf32>
    %45 = math.exp %44 : vector<8x8xf32>
    %cst_31 = arith.constant dense<0.000000e+00> : vector<8xf32>
    %46 = vector.multi_reduction <add>, %45, %cst_31 [1] : vector<8x8xf32> to vector<8xf32>
    %47 = vector.shape_cast %46 : vector<8xf32> to vector<8x1xf32>
    %48 = tpu.reciprocal %47 {approx = true} : vector<8x1xf32> -> vector<8x1xf32>
    %49 = vector.broadcast %48 : vector<8x1xf32> to vector<8x8xf32>
    %50 = arith.mulf %45, %49 : vector<8x8xf32>
    %c0_32 = arith.constant 0 : index
    %c0_33 = arith.constant 0 : index
    %51 = tpu.strided_load %arg11[%c0_32, %c0_33] {strides = array<i32: 8, 1>} : memref<64x8xf32, #tpu.memory_space<vmem>>, vector<8x8xf32>
    %52 = arith.truncf %50 : vector<8x8xf32> to vector<8x8xbf16>
    %53 = arith.truncf %51 : vector<8x8xf32> to vector<8x8xbf16>
    %cst_34 = arith.constant dense<0.000000e+00> : vector<8x8xf32>
    %54 = tpu.matmul %52, %53, %cst_34 {dimension_numbers = #tpu.dot_dimension_numbers<[1], [0], [0], [1], [0, 0, 1, 1], [], []>} : vector<8x8xbf16>, vector<8x8xbf16>, vector<8x8xf32> -> vector<8x8xf32>
    %55 = vector.extract_strided_slice %33 {offsets = [0, 8], sizes = [8, 8], strides = [1, 1]} : vector<8x64xbf16> to vector<8x8xbf16>
    %56 = vector.extract_strided_slice %34 {offsets = [0, 8], sizes = [8, 8], strides = [1, 1]} : vector<8x64xbf16> to vector<8x8xbf16>
    %cst_35 = arith.constant dense<0.000000e+00> : vector<8x8xf32>
    %57 = tpu.matmul %55, %56, %cst_35 {dimension_numbers = #tpu.dot_dimension_numbers<[1], [1], [0], [0], [0, 0, 1, 0], [], []>} : vector<8x8xbf16>, vector<8x8xbf16>, vector<8x8xf32> -> vector<8x8xf32>
    %cst_36 = arith.constant 0.353553385 : f32
    %58 = vector.broadcast %cst_36 : f32 to vector<8x8xf32>
    %59 = arith.mulf %57, %58 : vector<8x8xf32>
    %60 = arith.addf %59, %7 : vector<8x8xf32>
    %cst_37 = arith.constant dense<0xFF800000> : vector<8xf32>
    %61 = vector.multi_reduction <maximumf>, %60, %cst_37 [1] : vector<8x8xf32> to vector<8xf32>
    %62 = vector.shape_cast %61 : vector<8xf32> to vector<8x1xf32>
    %63 = vector.broadcast %62 : vector<8x1xf32> to vector<8x8xf32>
    %64 = arith.subf %60, %63 : vector<8x8xf32>
    %65 = math.exp %64 : vector<8x8xf32>
    %cst_38 = arith.constant dense<0.000000e+00> : vector<8xf32>
    %66 = vector.multi_reduction <add>, %65, %cst_38 [1] : vector<8x8xf32> to vector<8xf32>
    %67 = vector.shape_cast %66 : vector<8xf32> to vector<8x1xf32>
    %68 = tpu.reciprocal %67 {approx = true} : vector<8x1xf32> -> vector<8x1xf32>
    %69 = vector.broadcast %68 : vector<8x1xf32> to vector<8x8xf32>
    %70 = arith.mulf %65, %69 : vector<8x8xf32>
    %c1 = arith.constant 1 : index
    %c0_39 = arith.constant 0 : index
    %71 = tpu.strided_load %arg11[%c1, %c0_39] {strides = array<i32: 8, 1>} : memref<64x8xf32, #tpu.memory_space<vmem>>, vector<8x8xf32>
    %72 = arith.truncf %70 : vector<8x8xf32> to vector<8x8xbf16>
    %73 = arith.truncf %71 : vector<8x8xf32> to vector<8x8xbf16>
    %cst_40 = arith.constant dense<0.000000e+00> : vector<8x8xf32>
    %74 = tpu.matmul %72, %73, %cst_40 {dimension_numbers = #tpu.dot_dimension_numbers<[1], [0], [0], [1], [0, 0, 1, 1], [], []>} : vector<8x8xbf16>, vector<8x8xbf16>, vector<8x8xf32> -> vector<8x8xf32>
    %75 = vector.extract_strided_slice %33 {offsets = [0, 16], sizes = [8, 8], strides = [1, 1]} : vector<8x64xbf16> to vector<8x8xbf16>
    %76 = vector.extract_strided_slice %34 {offsets = [0, 16], sizes = [8, 8], strides = [1, 1]} : vector<8x64xbf16> to vector<8x8xbf16>
    %cst_41 = arith.constant dense<0.000000e+00> : vector<8x8xf32>
    %77 = tpu.matmul %75, %76, %cst_41 {dimension_numbers = #tpu.dot_dimension_numbers<[1], [1], [0], [0], [0, 0, 1, 0], [], []>} : vector<8x8xbf16>, vector<8x8xbf16>, vector<8x8xf32> -> vector<8x8xf32>
    %cst_42 = arith.constant 0.353553385 : f32
    %78 = vector.broadcast %cst_42 : f32 to vector<8x8xf32>
    %79 = arith.mulf %77, %78 : vector<8x8xf32>
    %80 = arith.addf %79, %7 : vector<8x8xf32>
    %cst_43 = arith.constant dense<0xFF800000> : vector<8xf32>
    %81 = vector.multi_reduction <maximumf>, %80, %cst_43 [1] : vector<8x8xf32> to vector<8xf32>
    %82 = vector.shape_cast %81 : vector<8xf32> to vector<8x1xf32>
    %83 = vector.broadcast %82 : vector<8x1xf32> to vector<8x8xf32>
    %84 = arith.subf %80, %83 : vector<8x8xf32>
    %85 = math.exp %84 : vector<8x8xf32>
    %cst_44 = arith.constant dense<0.000000e+00> : vector<8xf32>
    %86 = vector.multi_reduction <add>, %85, %cst_44 [1] : vector<8x8xf32> to vector<8xf32>
    %87 = vector.shape_cast %86 : vector<8xf32> to vector<8x1xf32>
    %88 = tpu.reciprocal %87 {approx = true} : vector<8x1xf32> -> vector<8x1xf32>
    %89 = vector.broadcast %88 : vector<8x1xf32> to vector<8x8xf32>
    %90 = arith.mulf %85, %89 : vector<8x8xf32>
    %c2 = arith.constant 2 : index
    %c0_45 = arith.constant 0 : index
    %91 = tpu.strided_load %arg11[%c2, %c0_45] {strides = array<i32: 8, 1>} : memref<64x8xf32, #tpu.memory_space<vmem>>, vector<8x8xf32>
    %92 = arith.truncf %90 : vector<8x8xf32> to vector<8x8xbf16>
    %93 = arith.truncf %91 : vector<8x8xf32> to vector<8x8xbf16>
    %cst_46 = arith.constant dense<0.000000e+00> : vector<8x8xf32>
    %94 = tpu.matmul %92, %93, %cst_46 {dimension_numbers = #tpu.dot_dimension_numbers<[1], [0], [0], [1], [0, 0, 1, 1], [], []>} : vector<8x8xbf16>, vector<8x8xbf16>, vector<8x8xf32> -> vector<8x8xf32>
    %95 = vector.extract_strided_slice %33 {offsets = [0, 24], sizes = [8, 8], strides = [1, 1]} : vector<8x64xbf16> to vector<8x8xbf16>
    %96 = vector.extract_strided_slice %34 {offsets = [0, 24], sizes = [8, 8], strides = [1, 1]} : vector<8x64xbf16> to vector<8x8xbf16>
    %cst_47 = arith.constant dense<0.000000e+00> : vector<8x8xf32>
    %97 = tpu.matmul %95, %96, %cst_47 {dimension_numbers = #tpu.dot_dimension_numbers<[1], [1], [0], [0], [0, 0, 1, 0], [], []>} : vector<8x8xbf16>, vector<8x8xbf16>, vector<8x8xf32> -> vector<8x8xf32>
    %cst_48 = arith.constant 0.353553385 : f32
    %98 = vector.broadcast %cst_48 : f32 to vector<8x8xf32>
    %99 = arith.mulf %97, %98 : vector<8x8xf32>
    %100 = arith.addf %99, %7 : vector<8x8xf32>
    %cst_49 = arith.constant dense<0xFF800000> : vector<8xf32>
    %101 = vector.multi_reduction <maximumf>, %100, %cst_49 [1] : vector<8x8xf32> to vector<8xf32>
    %102 = vector.shape_cast %101 : vector<8xf32> to vector<8x1xf32>
    %103 = vector.broadcast %102 : vector<8x1xf32> to vector<8x8xf32>
    %104 = arith.subf %100, %103 : vector<8x8xf32>
    %105 = math.exp %104 : vector<8x8xf32>
    %cst_50 = arith.constant dense<0.000000e+00> : vector<8xf32>
    %106 = vector.multi_reduction <add>, %105, %cst_50 [1] : vector<8x8xf32> to vector<8xf32>
    %107 = vector.shape_cast %106 : vector<8xf32> to vector<8x1xf32>
    %108 = tpu.reciprocal %107 {approx = true} : vector<8x1xf32> -> vector<8x1xf32>
    %109 = vector.broadcast %108 : vector<8x1xf32> to vector<8x8xf32>
    %110 = arith.mulf %105, %109 : vector<8x8xf32>
    %c3 = arith.constant 3 : index
    %c0_51 = arith.constant 0 : index
    %111 = tpu.strided_load %arg11[%c3, %c0_51] {strides = array<i32: 8, 1>} : memref<64x8xf32, #tpu.memory_space<vmem>>, vector<8x8xf32>
    %112 = arith.truncf %110 : vector<8x8xf32> to vector<8x8xbf16>
    %113 = arith.truncf %111 : vector<8x8xf32> to vector<8x8xbf16>
    %cst_52 = arith.constant dense<0.000000e+00> : vector<8x8xf32>
    %114 = tpu.matmul %112, %113, %cst_52 {dimension_numbers = #tpu.dot_dimension_numbers<[1], [0], [0], [1], [0, 0, 1, 1], [], []>} : vector<8x8xbf16>, vector<8x8xbf16>, vector<8x8xf32> -> vector<8x8xf32>
    %115 = vector.extract_strided_slice %33 {offsets = [0, 32], sizes = [8, 8], strides = [1, 1]} : vector<8x64xbf16> to vector<8x8xbf16>
    %116 = vector.extract_strided_slice %34 {offsets = [0, 32], sizes = [8, 8], strides = [1, 1]} : vector<8x64xbf16> to vector<8x8xbf16>
    %cst_53 = arith.constant dense<0.000000e+00> : vector<8x8xf32>
    %117 = tpu.matmul %115, %116, %cst_53 {dimension_numbers = #tpu.dot_dimension_numbers<[1], [1], [0], [0], [0, 0, 1, 0], [], []>} : vector<8x8xbf16>, vector<8x8xbf16>, vector<8x8xf32> -> vector<8x8xf32>
    %cst_54 = arith.constant 0.353553385 : f32
    %118 = vector.broadcast %cst_54 : f32 to vector<8x8xf32>
    %119 = arith.mulf %117, %118 : vector<8x8xf32>
    %120 = arith.addf %119, %7 : vector<8x8xf32>
    %cst_55 = arith.constant dense<0xFF800000> : vector<8xf32>
    %121 = vector.multi_reduction <maximumf>, %120, %cst_55 [1] : vector<8x8xf32> to vector<8xf32>
    %122 = vector.shape_cast %121 : vector<8xf32> to vector<8x1xf32>
    %123 = vector.broadcast %122 : vector<8x1xf32> to vector<8x8xf32>
    %124 = arith.subf %120, %123 : vector<8x8xf32>
    %125 = math.exp %124 : vector<8x8xf32>
    %cst_56 = arith.constant dense<0.000000e+00> : vector<8xf32>
    %126 = vector.multi_reduction <add>, %125, %cst_56 [1] : vector<8x8xf32> to vector<8xf32>
    %127 = vector.shape_cast %126 : vector<8xf32> to vector<8x1xf32>
    %128 = tpu.reciprocal %127 {approx = true} : vector<8x1xf32> -> vector<8x1xf32>
    %129 = vector.broadcast %128 : vector<8x1xf32> to vector<8x8xf32>
    %130 = arith.mulf %125, %129 : vector<8x8xf32>
    %c4 = arith.constant 4 : index
    %c0_57 = arith.constant 0 : index
    %131 = tpu.strided_load %arg11[%c4, %c0_57] {strides = array<i32: 8, 1>} : memref<64x8xf32, #tpu.memory_space<vmem>>, vector<8x8xf32>
    %132 = arith.truncf %130 : vector<8x8xf32> to vector<8x8xbf16>
    %133 = arith.truncf %131 : vector<8x8xf32> to vector<8x8xbf16>
    %cst_58 = arith.constant dense<0.000000e+00> : vector<8x8xf32>
    %134 = tpu.matmul %132, %133, %cst_58 {dimension_numbers = #tpu.dot_dimension_numbers<[1], [0], [0], [1], [0, 0, 1, 1], [], []>} : vector<8x8xbf16>, vector<8x8xbf16>, vector<8x8xf32> -> vector<8x8xf32>
    %135 = vector.extract_strided_slice %33 {offsets = [0, 40], sizes = [8, 8], strides = [1, 1]} : vector<8x64xbf16> to vector<8x8xbf16>
    %136 = vector.extract_strided_slice %34 {offsets = [0, 40], sizes = [8, 8], strides = [1, 1]} : vector<8x64xbf16> to vector<8x8xbf16>
    %cst_59 = arith.constant dense<0.000000e+00> : vector<8x8xf32>
    %137 = tpu.matmul %135, %136, %cst_59 {dimension_numbers = #tpu.dot_dimension_numbers<[1], [1], [0], [0], [0, 0, 1, 0], [], []>} : vector<8x8xbf16>, vector<8x8xbf16>, vector<8x8xf32> -> vector<8x8xf32>
    %cst_60 = arith.constant 0.353553385 : f32
    %138 = vector.broadcast %cst_60 : f32 to vector<8x8xf32>
    %139 = arith.mulf %137, %138 : vector<8x8xf32>
    %140 = arith.addf %139, %7 : vector<8x8xf32>
    %cst_61 = arith.constant dense<0xFF800000> : vector<8xf32>
    %141 = vector.multi_reduction <maximumf>, %140, %cst_61 [1] : vector<8x8xf32> to vector<8xf32>
    %142 = vector.shape_cast %141 : vector<8xf32> to vector<8x1xf32>
    %143 = vector.broadcast %142 : vector<8x1xf32> to vector<8x8xf32>
    %144 = arith.subf %140, %143 : vector<8x8xf32>
    %145 = math.exp %144 : vector<8x8xf32>
    %cst_62 = arith.constant dense<0.000000e+00> : vector<8xf32>
    %146 = vector.multi_reduction <add>, %145, %cst_62 [1] : vector<8x8xf32> to vector<8xf32>
    %147 = vector.shape_cast %146 : vector<8xf32> to vector<8x1xf32>
    %148 = tpu.reciprocal %147 {approx = true} : vector<8x1xf32> -> vector<8x1xf32>
    %149 = vector.broadcast %148 : vector<8x1xf32> to vector<8x8xf32>
    %150 = arith.mulf %145, %149 : vector<8x8xf32>
    %c5 = arith.constant 5 : index
    %c0_63 = arith.constant 0 : index
    %151 = tpu.strided_load %arg11[%c5, %c0_63] {strides = array<i32: 8, 1>} : memref<64x8xf32, #tpu.memory_space<vmem>>, vector<8x8xf32>
    %152 = arith.truncf %150 : vector<8x8xf32> to vector<8x8xbf16>
    %153 = arith.truncf %151 : vector<8x8xf32> to vector<8x8xbf16>
    %cst_64 = arith.constant dense<0.000000e+00> : vector<8x8xf32>
    %154 = tpu.matmul %152, %153, %cst_64 {dimension_numbers = #tpu.dot_dimension_numbers<[1], [0], [0], [1], [0, 0, 1, 1], [], []>} : vector<8x8xbf16>, vector<8x8xbf16>, vector<8x8xf32> -> vector<8x8xf32>
    %155 = vector.extract_strided_slice %33 {offsets = [0, 48], sizes = [8, 8], strides = [1, 1]} : vector<8x64xbf16> to vector<8x8xbf16>
    %156 = vector.extract_strided_slice %34 {offsets = [0, 48], sizes = [8, 8], strides = [1, 1]} : vector<8x64xbf16> to vector<8x8xbf16>
    %cst_65 = arith.constant dense<0.000000e+00> : vector<8x8xf32>
    %157 = tpu.matmul %155, %156, %cst_65 {dimension_numbers = #tpu.dot_dimension_numbers<[1], [1], [0], [0], [0, 0, 1, 0], [], []>} : vector<8x8xbf16>, vector<8x8xbf16>, vector<8x8xf32> -> vector<8x8xf32>
    %cst_66 = arith.constant 0.353553385 : f32
    %158 = vector.broadcast %cst_66 : f32 to vector<8x8xf32>
    %159 = arith.mulf %157, %158 : vector<8x8xf32>
    %160 = arith.addf %159, %7 : vector<8x8xf32>
    %cst_67 = arith.constant dense<0xFF800000> : vector<8xf32>
    %161 = vector.multi_reduction <maximumf>, %160, %cst_67 [1] : vector<8x8xf32> to vector<8xf32>
    %162 = vector.shape_cast %161 : vector<8xf32> to vector<8x1xf32>
    %163 = vector.broadcast %162 : vector<8x1xf32> to vector<8x8xf32>
    %164 = arith.subf %160, %163 : vector<8x8xf32>
    %165 = math.exp %164 : vector<8x8xf32>
    %cst_68 = arith.constant dense<0.000000e+00> : vector<8xf32>
    %166 = vector.multi_reduction <add>, %165, %cst_68 [1] : vector<8x8xf32> to vector<8xf32>
    %167 = vector.shape_cast %166 : vector<8xf32> to vector<8x1xf32>
    %168 = tpu.reciprocal %167 {approx = true} : vector<8x1xf32> -> vector<8x1xf32>
    %169 = vector.broadcast %168 : vector<8x1xf32> to vector<8x8xf32>
    %170 = arith.mulf %165, %169 : vector<8x8xf32>
    %c6 = arith.constant 6 : index
    %c0_69 = arith.constant 0 : index
    %171 = tpu.strided_load %arg11[%c6, %c0_69] {strides = array<i32: 8, 1>} : memref<64x8xf32, #tpu.memory_space<vmem>>, vector<8x8xf32>
    %172 = arith.truncf %170 : vector<8x8xf32> to vector<8x8xbf16>
    %173 = arith.truncf %171 : vector<8x8xf32> to vector<8x8xbf16>
    %cst_70 = arith.constant dense<0.000000e+00> : vector<8x8xf32>
    %174 = tpu.matmul %172, %173, %cst_70 {dimension_numbers = #tpu.dot_dimension_numbers<[1], [0], [0], [1], [0, 0, 1, 1], [], []>} : vector<8x8xbf16>, vector<8x8xbf16>, vector<8x8xf32> -> vector<8x8xf32>
    %175 = vector.extract_strided_slice %33 {offsets = [0, 56], sizes = [8, 8], strides = [1, 1]} : vector<8x64xbf16> to vector<8x8xbf16>
    %176 = vector.extract_strided_slice %34 {offsets = [0, 56], sizes = [8, 8], strides = [1, 1]} : vector<8x64xbf16> to vector<8x8xbf16>
    %cst_71 = arith.constant dense<0.000000e+00> : vector<8x8xf32>
    %177 = tpu.matmul %175, %176, %cst_71 {dimension_numbers = #tpu.dot_dimension_numbers<[1], [1], [0], [0], [0, 0, 1, 0], [], []>} : vector<8x8xbf16>, vector<8x8xbf16>, vector<8x8xf32> -> vector<8x8xf32>
    %cst_72 = arith.constant 0.353553385 : f32
    %178 = vector.broadcast %cst_72 : f32 to vector<8x8xf32>
    %179 = arith.mulf %177, %178 : vector<8x8xf32>
    %180 = arith.addf %179, %7 : vector<8x8xf32>
    %cst_73 = arith.constant dense<0xFF800000> : vector<8xf32>
    %181 = vector.multi_reduction <maximumf>, %180, %cst_73 [1] : vector<8x8xf32> to vector<8xf32>
    %182 = vector.shape_cast %181 : vector<8xf32> to vector<8x1xf32>
    %183 = vector.broadcast %182 : vector<8x1xf32> to vector<8x8xf32>
    %184 = arith.subf %180, %183 : vector<8x8xf32>
    %185 = math.exp %184 : vector<8x8xf32>
    %cst_74 = arith.constant dense<0.000000e+00> : vector<8xf32>
    %186 = vector.multi_reduction <add>, %185, %cst_74 [1] : vector<8x8xf32> to vector<8xf32>
    %187 = vector.shape_cast %186 : vector<8xf32> to vector<8x1xf32>
    %188 = tpu.reciprocal %187 {approx = true} : vector<8x1xf32> -> vector<8x1xf32>
    %189 = vector.broadcast %188 : vector<8x1xf32> to vector<8x8xf32>
    %190 = arith.mulf %185, %189 : vector<8x8xf32>
    %c7 = arith.constant 7 : index
    %c0_75 = arith.constant 0 : index
    %191 = tpu.strided_load %arg11[%c7, %c0_75] {strides = array<i32: 8, 1>} : memref<64x8xf32, #tpu.memory_space<vmem>>, vector<8x8xf32>
    %192 = arith.truncf %190 : vector<8x8xf32> to vector<8x8xbf16>
    %193 = arith.truncf %191 : vector<8x8xf32> to vector<8x8xbf16>
    %cst_76 = arith.constant dense<0.000000e+00> : vector<8x8xf32>
    %194 = tpu.matmul %192, %193, %cst_76 {dimension_numbers = #tpu.dot_dimension_numbers<[1], [0], [0], [1], [0, 0, 1, 1], [], []>} : vector<8x8xbf16>, vector<8x8xbf16>, vector<8x8xf32> -> vector<8x8xf32>
    %195 = tpu.concatenate %50, %70, %90, %110, %130, %150, %170, %190 in 1 : vector<8x8xf32>, vector<8x8xf32>, vector<8x8xf32>, vector<8x8xf32>, vector<8x8xf32>, vector<8x8xf32>, vector<8x8xf32>, vector<8x8xf32> -> vector<8x64xf32>
    %c0_77 = arith.constant 0 : index
    %c0_78 = arith.constant 0 : index
    %c0_79 = arith.constant 0 : index
    %196 = vector.load %arg10[%c0_77, %c0_78, %c0_79] : memref<1x8x64xf32, #tpu.memory_space<vmem>>, vector<1x8x64xf32>
    %197 = vector.shape_cast %196 : vector<1x8x64xf32> to vector<8x64xf32>
    %198 = vector.shape_cast %195 : vector<8x64xf32> to vector<1x8x64xf32>
    tpu.vector_store %arg10[%c0_77, %c0_78, %c0_79], %198 {strides = array<i32>} : memref<1x8x64xf32, #tpu.memory_space<vmem>>, vector<1x8x64xf32>,
    %199 = tpu.concatenate %54, %74, %94, %114, %134, %154, %174, %194 in 1 : vector<8x8xf32>, vector<8x8xf32>, vector<8x8xf32>, vector<8x8xf32>, vector<8x8xf32>, vector<8x8xf32>, vector<8x8xf32>, vector<8x8xf32> -> vector<8x64xf32>
    %200 = arith.truncf %199 : vector<8x64xf32> to vector<8x64xbf16>
    %c0_80 = arith.constant 0 : index
    %c0_81 = arith.constant 0 : index
    %201 = vector.load %arg8[%c0_80, %c0_81] : memref<64x32xbf16, #tpu.memory_space<vmem>>, vector<64x32xbf16>
    %cst_82 = arith.constant dense<0.000000e+00> : vector<8x32xf32>
    %202 = tpu.matmul %200, %201, %cst_82 {dimension_numbers = #tpu.dot_dimension_numbers<[1], [0], [0], [1], [0, 0, 1, 1], [], []>} : vector<8x64xbf16>, vector<64x32xbf16>, vector<8x32xf32> -> vector<8x32xf32>
    %203 = arith.addf %202, %1 : vector<8x32xf32>
    %cst_83 = arith.constant dense<0.000000e+00> : vector<8xf32>
    %204 = vector.multi_reduction <add>, %203, %cst_83 [1] : vector<8x32xf32> to vector<8xf32>
    %205 = vector.shape_cast %204 : vector<8xf32> to vector<8x1xf32>
    %cst_84 = arith.constant 3.200000e+01 : f32
    %206 = vector.broadcast %cst_84 : f32 to vector<8x1xf32>
    %207 = arith.divf %205, %206 : vector<8x1xf32>
    %208 = vector.broadcast %207 : vector<8x1xf32> to vector<8x32xf32>
    %209 = arith.subf %203, %208 : vector<8x32xf32>
    %210 = arith.mulf %209, %209 : vector<8x32xf32>
    %cst_85 = arith.constant dense<0.000000e+00> : vector<8xf32>
    %211 = vector.multi_reduction <add>, %210, %cst_85 [1] : vector<8x32xf32> to vector<8xf32>
    %212 = vector.shape_cast %211 : vector<8xf32> to vector<8x1xf32>
    %cst_86 = arith.constant 3.200000e+01 : f32
    %213 = vector.broadcast %cst_86 : f32 to vector<8x1xf32>
    %214 = arith.divf %212, %213 : vector<8x1xf32>
    %215 = vector.broadcast %207 : vector<8x1xf32> to vector<8x32xf32>
    %216 = arith.subf %203, %215 : vector<8x32xf32>
    %cst_87 = arith.constant 9.99999974E-6 : f32
    %217 = vector.broadcast %cst_87 : f32 to vector<8x1xf32>
    %218 = arith.addf %214, %217 : vector<8x1xf32>
    %219 = math.rsqrt %218 : vector<8x1xf32>
    %220 = vector.broadcast %219 : vector<8x1xf32> to vector<8x32xf32>
    %221 = arith.mulf %216, %220 : vector<8x32xf32>
    %c0_88 = arith.constant 0 : index
    %c0_89 = arith.constant 0 : index
    %c0_90 = arith.constant 0 : index
    %222 = vector.load %arg9[%c0_88, %c0_89, %c0_90] : memref<1x8x32xf32, #tpu.memory_space<vmem>>, vector<1x8x32xf32>
    %223 = vector.shape_cast %222 : vector<1x8x32xf32> to vector<8x32xf32>
    %224 = vector.shape_cast %221 : vector<8x32xf32> to vector<1x8x32xf32>
    tpu.vector_store %arg9[%c0_88, %c0_89, %c0_90], %224 {strides = array<i32>} : memref<1x8x32xf32, #tpu.memory_space<vmem>>, vector<1x8x32xf32>,
    return
  }
  func.func @transform_0(%arg0: i32) -> (i32, i32, i32) {
    %c0_i32 = arith.constant 0 : i32
    %c0_i32_0 = arith.constant 0 : i32
    %c0_i32_1 = arith.constant 0 : i32
    return %arg0, %c0_i32, %c0_i32_0 : i32, i32, i32
  }
  func.func @transform_1(%arg0: i32) -> (i32, i32, i32) {
    %c0_i32 = arith.constant 0 : i32
    %c0_i32_0 = arith.constant 0 : i32
    %c0_i32_1 = arith.constant 0 : i32
    return %arg0, %c0_i32, %c0_i32_0 : i32, i32, i32
  }
  func.func @transform_2(%arg0: i32) -> (i32, i32, i32) {
    %c0_i32 = arith.constant 0 : i32
    %c0_i32_0 = arith.constant 0 : i32
    %c0_i32_1 = arith.constant 0 : i32
    return %arg0, %c0_i32, %c0_i32_0 : i32, i32, i32
  }
  func.func @transform_3(%arg0: i32) -> (i32, i32, i32) {
    %c0_i32 = arith.constant 0 : i32
    %c0_i32_0 = arith.constant 0 : i32
    %c0_i32_1 = arith.constant 0 : i32
    return %arg0, %c0_i32, %c0_i32_0 : i32, i32, i32
  }
  func.func @transform_4(%arg0: i32) -> (i32, i32) {
    %c0_i32 = arith.constant 0 : i32
    %c0_i32_0 = arith.constant 0 : i32
    %c0_i32_1 = arith.constant 0 : i32
    return %c0_i32, %c0_i32_0 : i32, i32
  }
  func.func @transform_5(%arg0: i32) -> (i32, i32) {
    %c0_i32 = arith.constant 0 : i32
    %c0_i32_0 = arith.constant 0 : i32
    %c0_i32_1 = arith.constant 0 : i32
    return %c0_i32, %c0_i32_0 : i32, i32
  }
  func.func @transform_6(%arg0: i32) -> (i32, i32) {
    %c0_i32 = arith.constant 0 : i32
    %c0_i32_0 = arith.constant 0 : i32
    %c0_i32_1 = arith.constant 0 : i32
    return %c0_i32, %c0_i32_0 : i32, i32
  }
  func.func @transform_7(%arg0: i32) -> (i32, i32) {
    %c0_i32 = arith.constant 0 : i32
    %c0_i32_0 = arith.constant 0 : i32
    %c0_i32_1 = arith.constant 0 : i32
    return %c0_i32, %c0_i32_0 : i32, i32
  }
  func.func @transform_8(%arg0: i32) -> (i32, i32, i32) {
    %c0_i32 = arith.constant 0 : i32
    %c0_i32_0 = arith.constant 0 : i32
    %c0_i32_1 = arith.constant 0 : i32
    return %arg0, %c0_i32, %c0_i32_0 : i32, i32, i32
  }
  func.func @transform_9(%arg0: i32) -> (i32, i32, i32) {
    %c0_i32 = arith.constant 0 : i32
    %c0_i32_0 = arith.constant 0 : i32
    %c0_i32_1 = arith.constant 0 : i32
    return %arg0, %c0_i32, %c0_i32_0 : i32, i32, i32
  }
}

</mosaic_0001>

<llo_original>
// kernel: tpu_custom_call.1
$region0: #{tpu_custom_call.1}
  #allocation0 [shape = 'u32[]', space=smem, size = 0x4, offset = 0x4, fixed_abs, tag = 'smem constant byte address 0x4 - core index']
  #allocation1 [shape = 'u32[72,128]{1,0:T(1,128)}', space=vmem, size = 0x9000, scoped, tag = 'internal scratch']
  #allocation2 [shape = 'f32[64,8]{1,0:T(8,128)}', space=vmem, size = 0x8000, scoped, tag = 'scratch operand']
  %s0 = inlined_call_operand.vmem [shape: f32[2,8,8], index: 0, kind: input, shape index: {}]
  %s1 = inlined_call_operand.vmem [shape: f32[2,8,32], index: 1, kind: input, shape index: {}]
  %s2 = inlined_call_operand.vmem [shape: f32[2,8,32], index: 2, kind: input, shape index: {}]
  %s3 = inlined_call_operand.hbm [shape: f32[2,8,32], index: 3, kind: input, shape index: {}]
  %s4 = inlined_call_operand.hbm [shape: bf16[32,64], index: 4, kind: input, shape index: {}]
  %s5 = inlined_call_operand.hbm [shape: bf16[32,64], index: 5, kind: input, shape index: {}]
  %s6 = inlined_call_operand.hbm [shape: bf16[32,64], index: 6, kind: input, shape index: {}]
  %s7 = inlined_call_operand.vmem [shape: bf16[64,32], index: 7, kind: input, shape index: {}]
  %s8 = inlined_call_operand.hbm [shape: f32[2,8,32], index: 8, kind: output, shape index: {0}]
  %s9 = inlined_call_operand.hbm [shape: f32[2,8,64], index: 9, kind: output, shape index: {1}]
  %10 = xla_tuple %s8, %s9
  %s11 = sld [smem:[#allocation0]]
  $region89: #{tpu_custom_call.1} parent=0
    _
  %s13 = ssub.s32 1, %s11
  %s14 = scalar_select 0, %s13, %s11
  $region1: #{tpu_custom_call.1} parent=0
    #allocation3 [shape = 'u8[8192]{0}', space=vmem, size = 0x2000, scoped, tag = 'input window, operand 3']
    #allocation4 [shape = 's32[2]{0}', space=sflag, size = 0x8, scoped, tag = 'scoped memory for tpu_custom_call.1']
    #allocation5 [shape = 's32[2]{0}', space=sflag, size = 0x8, scoped, tag = 'scoped memory for tpu_custom_call.1']
    #allocation6 [shape = 'u8[8192]{0}', space=vmem, size = 0x2000, scoped, tag = 'input window, operand 4, single buffered']
    #allocation7 [shape = 's32[1]{0}', space=sflag, size = 0x4, scoped, tag = 'scoped memory for tpu_custom_call.1']
    #allocation8 [shape = 'u8[8192]{0}', space=vmem, size = 0x2000, scoped, tag = 'input window, operand 5, single buffered']
    #allocation9 [shape = 'u8[8192]{0}', space=vmem, size = 0x2000, scoped, tag = 'input window, operand 6, single buffered']
    #allocation10 [shape = 's32[1]{0}', space=sflag, size = 0x4, scoped, tag = 'scoped memory for tpu_custom_call.1']
    #allocation11 [shape = 'u8[8192]{0}', space=vmem, size = 0x2000, scoped, tag = 'output window, operand 0']
    #allocation12 [shape = 'u8[8192]{0}', space=vmem, size = 0x2000, scoped, tag = 'output window, operand 1']
    #allocation13 [shape = 's32[2]{0}', space=sflag, size = 0x8, scoped, tag = 'scoped memory for tpu_custom_call.1']
    %15 = vsyncpa [#allocation4], 0
    %s16 = scalar_lea.sflag [#allocation4], 1
    %17 = vsyncpa %s16, 0
    %18 = vsyncpa [#allocation7], 0
    %19 = vsyncpa [#allocation10], 0
    %20 = vsyncpa [#allocation5], 0
    %s21 = scalar_lea.sflag [#allocation5], 1
    %22 = vsyncpa %s21, 0
    %23 = vsyncpa [#allocation13], 0
    %s24 = scalar_lea.sflag [#allocation13], 1
    %25 = vsyncpa %s24, 0
    loop: start=0, step=1, limit=4
    $region2: #{tpu_custom_call.1} parent=1 // loop_pre_header
      _
    $region3: #{tpu_custom_call.1} parent=1 // loop_header
      %s27 = sphi 0, %s31
      %p28 = scmp.ge.s32.totalorder %s27, 4
      %s37 = sphi 0, %s39
      %s40 = sphi 0, %s37
      %s41 = sphi 0, %s40
      %s57 = sphi 0, %s41
      %s63 = sphi 0, %s65
      %s66 = sphi 0, %s63
      %s67 = sphi 0, %s66
      %s83 = sphi 0, %s67
      %s89 = sphi 0, %s91
      %s92 = sphi 0, %s89
      %s93 = sphi 0, %s92
      %s109 = sphi 0, %s93
      %s115 = sphi 0, %s117
      %s118 = sphi 0, %s115
      %s119 = sphi 0, %s118
      %s135 = sphi 0, %s119
      %s139 = sphi 0, %s139
      %s141 = sphi 0, %s139
      %s142 = sphi 0, %s141
      %s156 = sphi 0, %s142
      %s160 = sphi 0, %s160
      %s162 = sphi 0, %s160
      %s163 = sphi 0, %s162
      %s177 = sphi 0, %s163
      %s181 = sphi 0, %s181
      %s183 = sphi 0, %s181
      %s184 = sphi 0, %s183
      %s198 = sphi 0, %s184
      %s202 = sphi 0, %s202
      %s204 = sphi 0, %s202
      %s205 = sphi 0, %s204
      %s219 = sphi 0, %s205
      %s225 = sphi 0, %s227
      %s228 = sphi 0, %s225
      %s229 = sphi 0, %s228
      %s245 = sphi 0, %s229
      %s251 = sphi 0, %s253
      %s254 = sphi 0, %s251
      %s255 = sphi 0, %s254
      %s271 = sphi 0, %s255
    $region4: #{tpu_custom_call.1} parent=1 // loop_header_branch
      %30 = sbr.rel (%p28) target = $region8
    $region5: #{tpu_custom_call.1} parent=1 // loop_body
      %s32 = ssub.s32 %s27, 1
      %s33 = ssub.s32 %s27, 2
      %s34 = sadd.s32 %s27, 1
      %s35 = ssub.s32 %s27, %s34
      %p36 = scmp.eq.s32.totalorder %s35, 0
      %s38 = sadd.s32 %s37, 1
      %s39 = scalar_select %p36, %s37, %s38
      %p42 = pneg %p36
      %p43 = scmp.eq.s32.totalorder %s27, 1
      %p44 = por %p42, %p43
      %p45 = scmp.ne.s32.totalorder %s37, %s40
      %p46 = scmp.eq.s32.totalorder %s27, 0
      %p47 = por %p45, %p46
      %p48 = scmp.ne.s32.totalorder %s37, %s40
      %p49 = scmp.eq.s32.totalorder %s32, 1
      %p50 = por %p48, %p49
      %p51 = scmp.ne.s32.totalorder %s40, %s41
      %p52 = scmp.eq.s32.totalorder %s32, 0
      %p53 = por %p51, %p52
      %p54 = scmp.ne.s32.totalorder %s40, %s41
      %p55 = scmp.eq.s32.totalorder %s33, 1
      %p56 = por %p54, %p55
      %p58 = scmp.ne.s32.totalorder %s41, %s57
      %p59 = scmp.eq.s32.totalorder %s33, 0
      %p60 = por %p58, %p59
      %s61 = ssub.s32 %s27, %s34
      %p62 = scmp.eq.s32.totalorder %s61, 0
      %s64 = sadd.s32 %s63, 1
      %s65 = scalar_select %p62, %s63, %s64
      %p68 = pneg %p62
      %p69 = scmp.eq.s32.totalorder %s27, 1
      %p70 = por %p68, %p69
      %p71 = scmp.ne.s32.totalorder %s63, %s66
      %p72 = scmp.eq.s32.totalorder %s27, 0
      %p73 = por %p71, %p72
      %p74 = scmp.ne.s32.totalorder %s63, %s66
      %p75 = scmp.eq.s32.totalorder %s32, 1
      %p76 = por %p74, %p75
      %p77 = scmp.ne.s32.totalorder %s66, %s67
      %p78 = scmp.eq.s32.totalorder %s32, 0
      %p79 = por %p77, %p78
      %p80 = scmp.ne.s32.totalorder %s66, %s67
      %p81 = scmp.eq.s32.totalorder %s33, 1
      %p82 = por %p80, %p81
      %p84 = scmp.ne.s32.totalorder %s67, %s83
      %p85 = scmp.eq.s32.totalorder %s33, 0
      %p86 = por %p84, %p85
      %s87 = ssub.s32 %s27, %s34
      %p88 = scmp.eq.s32.totalorder %s87, 0
      %s90 = sadd.s32 %s89, 1
      %s91 = scalar_select %p88, %s89, %s90
      %p94 = pneg %p88
      %p95 = scmp.eq.s32.totalorder %s27, 1
      %p96 = por %p94, %p95
      %p97 = scmp.ne.s32.totalorder %s89, %s92
      %p98 = scmp.eq.s32.totalorder %s27, 0
      %p99 = por %p97, %p98
      %p100 = scmp.ne.s32.totalorder %s89, %s92
      %p101 = scmp.eq.s32.totalorder %s32, 1
      %p102 = por %p100, %p101
      %p103 = scmp.ne.s32.totalorder %s92, %s93
      %p104 = scmp.eq.s32.totalorder %s32, 0
      %p105 = por %p103, %p104
      %p106 = scmp.ne.s32.totalorder %s92, %s93
      %p107 = scmp.eq.s32.totalorder %s33, 1
      %p108 = por %p106, %p107
      %p110 = scmp.ne.s32.totalorder %s93, %s109
      %p111 = scmp.eq.s32.totalorder %s33, 0
      %p112 = por %p110, %p111
      %s113 = ssub.s32 %s27, %s34
      %p114 = scmp.eq.s32.totalorder %s113, 0
      %s116 = sadd.s32 %s115, 1
      %s117 = scalar_select %p114, %s115, %s116
      %p120 = pneg %p114
      %p121 = scmp.eq.s32.totalorder %s27, 1
      %p122 = por %p120, %p121
      %p123 = scmp.ne.s32.totalorder %s115, %s118
      %p124 = scmp.eq.s32.totalorder %s27, 0
      %p125 = por %p123, %p124
      %p126 = scmp.ne.s32.totalorder %s115, %s118
      %p127 = scmp.eq.s32.totalorder %s32, 1
      %p128 = por %p126, %p127
      %p129 = scmp.ne.s32.totalorder %s118, %s119
      %p130 = scmp.eq.s32.totalorder %s32, 0
      %p131 = por %p129, %p130
      %p132 = scmp.ne.s32.totalorder %s118, %s119
      %p133 = scmp.eq.s32.totalorder %s33, 1
      %p134 = por %p132, %p133
      %p136 = scmp.ne.s32.totalorder %s119, %s135
      %p137 = scmp.eq.s32.totalorder %s33, 0
      %p138 = por %p136, %p137
      %s140 = sadd.s32 %s139, 1
      %p143 = scmp.eq.s32.totalorder %s27, 1
      %p144 = scmp.ne.s32.totalorder %s139, %s141
      %p145 = scmp.eq.s32.totalorder %s27, 0
      %p146 = por %p144, %p145
      %p147 = scmp.ne.s32.totalorder %s139, %s141
      %p148 = scmp.eq.s32.totalorder %s32, 1
      %p149 = por %p147, %p148
      %p150 = scmp.ne.s32.totalorder %s141, %s142
      %p151 = scmp.eq.s32.totalorder %s32, 0
      %p152 = por %p150, %p151
      %p153 = scmp.ne.s32.totalorder %s141, %s142
      %p154 = scmp.eq.s32.totalorder %s33, 1
      %p155 = por %p153, %p154
      %p157 = scmp.ne.s32.totalorder %s142, %s156
      %p158 = scmp.eq.s32.totalorder %s33, 0
      %p159 = por %p157, %p158
      %s161 = sadd.s32 %s160, 1
      %p164 = scmp.eq.s32.totalorder %s27, 1
      %p165 = scmp.ne.s32.totalorder %s160, %s162
      %p166 = scmp.eq.s32.totalorder %s27, 0
      %p167 = por %p165, %p166
      %p168 = scmp.ne.s32.totalorder %s160, %s162
      %p169 = scmp.eq.s32.totalorder %s32, 1
      %p170 = por %p168, %p169
      %p171 = scmp.ne.s32.totalorder %s162, %s163
      %p172 = scmp.eq.s32.totalorder %s32, 0
      %p173 = por %p171, %p172
      %p174 = scmp.ne.s32.totalorder %s162, %s163
      %p175 = scmp.eq.s32.totalorder %s33, 1
      %p176 = por %p174, %p175
      %p178 = scmp.ne.s32.totalorder %s163, %s177
      %p179 = scmp.eq.s32.totalorder %s33, 0
      %p180 = por %p178, %p179
      %s182 = sadd.s32 %s181, 1
      %p185 = scmp.eq.s32.totalorder %s27, 1
      %p186 = scmp.ne.s32.totalorder %s181, %s183
      %p187 = scmp.eq.s32.totalorder %s27, 0
      %p188 = por %p186, %p187
      %p189 = scmp.ne.s32.totalorder %s181, %s183
      %p190 = scmp.eq.s32.totalorder %s32, 1
      %p191 = por %p189, %p190
      %p192 = scmp.ne.s32.totalorder %s183, %s184
      %p193 = scmp.eq.s32.totalorder %s32, 0
      %p194 = por %p192, %p193
      %p195 = scmp.ne.s32.totalorder %s183, %s184
      %p196 = scmp.eq.s32.totalorder %s33, 1
      %p197 = por %p195, %p196
      %p199 = scmp.ne.s32.totalorder %s184, %s198
      %p200 = scmp.eq.s32.totalorder %s33, 0
      %p201 = por %p199, %p200
      %s203 = sadd.s32 %s202, 1
      %p206 = scmp.eq.s32.totalorder %s27, 1
      %p207 = scmp.ne.s32.totalorder %s202, %s204
      %p208 = scmp.eq.s32.totalorder %s27, 0
      %p209 = por %p207, %p208
      %p210 = scmp.ne.s32.totalorder %s202, %s204
      %p211 = scmp.eq.s32.totalorder %s32, 1
      %p212 = por %p210, %p211
      %p213 = scmp.ne.s32.totalorder %s204, %s205
      %p214 = scmp.eq.s32.totalorder %s32, 0
      %p215 = por %p213, %p214
      %p216 = scmp.ne.s32.totalorder %s204, %s205
      %p217 = scmp.eq.s32.totalorder %s33, 1
      %p218 = por %p216, %p217
      %p220 = scmp.ne.s32.totalorder %s205, %s219
      %p221 = scmp.eq.s32.totalorder %s33, 0
      %p222 = por %p220, %p221
      %s223 = ssub.s32 %s27, %s34
      %p224 = scmp.eq.s32.totalorder %s223, 0
      %s226 = sadd.s32 %s225, 1
      %s227 = scalar_select %p224, %s225, %s226
      %p230 = pneg %p224
      %p231 = scmp.eq.s32.totalorder %s27, 1
      %p232 = por %p230, %p231
      %p233 = scmp.ne.s32.totalorder %s225, %s228
      %p234 = scmp.eq.s32.totalorder %s27, 0
      %p235 = por %p233, %p234
      %p236 = scmp.ne.s32.totalorder %s225, %s228
      %p237 = scmp.eq.s32.totalorder %s32, 1
      %p238 = por %p236, %p237
      %p239 = scmp.ne.s32.totalorder %s228, %s229
      %p240 = scmp.eq.s32.totalorder %s32, 0
      %p241 = por %p239, %p240
      %p242 = scmp.ne.s32.totalorder %s228, %s229
      %p243 = scmp.eq.s32.totalorder %s33, 1
      %p244 = por %p242, %p243
      %p246 = scmp.ne.s32.totalorder %s229, %s245
      %p247 = scmp.eq.s32.totalorder %s33, 0
      %p248 = por %p246, %p247
      %s249 = ssub.s32 %s27, %s34
      %p250 = scmp.eq.s32.totalorder %s249, 0
      %s252 = sadd.s32 %s251, 1
      %s253 = scalar_select %p250, %s251, %s252
      %p256 = pneg %p250
      %p257 = scmp.eq.s32.totalorder %s27, 1
      %p258 = por %p256, %p257
      %p259 = scmp.ne.s32.totalorder %s251, %s254
      %p260 = scmp.eq.s32.totalorder %s27, 0
      %p261 = por %p259, %p260
      %p262 = scmp.ne.s32.totalorder %s251, %s254
      %p263 = scmp.eq.s32.totalorder %s32, 1
      %p264 = por %p262, %p263
      %p265 = scmp.ne.s32.totalorder %s254, %s255
      %p266 = scmp.eq.s32.totalorder %s32, 0
      %p267 = por %p265, %p266
      %p268 = scmp.ne.s32.totalorder %s254, %s255
      %p269 = scmp.eq.s32.totalorder %s33, 1
      %p270 = por %p268, %p269
      %p272 = scmp.ne.s32.totalorder %s255, %s271
      %p273 = scmp.eq.s32.totalorder %s33, 0
      %p274 = por %p272, %p273
      %p275 = scmp.le.s32.totalorder 1, %s27
      %p276 = scmp.lt.s32.totalorder %s27, 3
      %p277 = pnand %p275, %p276
      %p278 = pneg %p277
      // Predicated region
      $region9: #{tpu_custom_call.1} parent=5 // pred_check
        _
      $region10: #{tpu_custom_call.1} parent=5 // pred_check_branch
        %280 = sbr.rel (%p277) target = $region12
      $region11: #{tpu_custom_call.1} parent=5 // pred_region
        %s281 = ssub.s32 %s27, 1
        // Predicated region
        $region13: #{tpu_custom_call.1} parent=11 // pred_check
          %p282 = pneg %p152
        $region14: #{tpu_custom_call.1} parent=11 // pred_check_branch
          %284 = sbr.rel (%p282) target = $region16
        $region15: #{tpu_custom_call.1} parent=11 // pred_region
          %286 = vsyncadd [#allocation7], 0
          %s287 = sshll.u32 %s4, 4
          %s288 = int_to_ptr.hbm [resolvable:$true] %s287
          %s289 = sshll.u32 [#allocation6], 4
          %s290 = int_to_ptr.vmem [resolvable:$true] %s289
          %295 = dma.hbm_to_vmem [thread:$0]  %s288, 256, %s290, [#allocation7], 64, 64, 4
        $region16: #{tpu_custom_call.1} parent=11 // pred_fallthru
          _
        // Predicated region
        $region17: #{tpu_custom_call.1} parent=11 // pred_check
          %p296 = pneg %p173
        $region18: #{tpu_custom_call.1} parent=11 // pred_check_branch
          %298 = sbr.rel (%p296) target = $region20
        $region19: #{tpu_custom_call.1} parent=11 // pred_region
          %300 = vsyncadd [#allocation7], 0
          %s301 = sshll.u32 %s5, 4
          %s302 = int_to_ptr.hbm [resolvable:$true] %s301
          %s303 = sshll.u32 [#allocation8], 4
          %s304 = int_to_ptr.vmem [resolvable:$true] %s303
          %309 = dma.hbm_to_vmem [thread:$0]  %s302, 256, %s304, [#allocation7], 64, 64, 4
        $region20: #{tpu_custom_call.1} parent=11 // pred_fallthru
          _
        // Predicated region
        $region21: #{tpu_custom_call.1} parent=11 // pred_check
          %p310 = pneg %p194
        $region22: #{tpu_custom_call.1} parent=11 // pred_check_branch
          %312 = sbr.rel (%p310) target = $region24
        $region23: #{tpu_custom_call.1} parent=11 // pred_region
          %314 = vsyncadd [#allocation10], 0
          %s315 = sshll.u32 %s6, 4
          %s316 = int_to_ptr.hbm [resolvable:$true] %s315
          %s317 = sshll.u32 [#allocation9], 4
          %s318 = int_to_ptr.vmem [resolvable:$true] %s317
          %323 = dma.hbm_to_vmem [thread:$0]  %s316, 256, %s318, [#allocation10], 64, 64, 4
        $region24: #{tpu_custom_call.1} parent=11 // pred_fallthru
          _
        // Predicated region
        $region25: #{tpu_custom_call.1} parent=11 // pred_check
          %p324 = pneg %p215
        $region26: #{tpu_custom_call.1} parent=11 // pred_check_branch
          %326 = sbr.rel (%p324) target = $region28
        $region27: #{tpu_custom_call.1} parent=11 // pred_region
          _
        $region28: #{tpu_custom_call.1} parent=11 // pred_fallthru
          _
      $region12: #{tpu_custom_call.1} parent=5 // pred_fallthru
        _
      %p327 = scmp.lt.s32.totalorder %s27, 2
      // Predicated region
      $region29: #{tpu_custom_call.1} parent=5 // pred_check
        %p328 = pneg %p327
      $region30: #{tpu_custom_call.1} parent=5 // pred_check_branch
        %330 = sbr.rel (%p328) target = $region32
      $region31: #{tpu_custom_call.1} parent=5 // pred_region
        // Predicated region
        $region33: #{tpu_custom_call.1} parent=31 // pred_check
          %p331 = pneg %p47
        $region34: #{tpu_custom_call.1} parent=31 // pred_check_branch
          %333 = sbr.rel (%p331) target = $region36
        $region35: #{tpu_custom_call.1} parent=31 // pred_region
          %p334 = scmp.lt.s32.totalorder %s27, 1
          %s335 = scalar_select %p334, %s27, 1
          %s336 = smul.addr %s335, 8
          %s337 = scalar_lea.vmem %s0, %s336
        $region36: #{tpu_custom_call.1} parent=31 // pred_fallthru
          _
        // Predicated region
        $region37: #{tpu_custom_call.1} parent=31 // pred_check
          %p338 = pneg %p73
        $region38: #{tpu_custom_call.1} parent=31 // pred_check_branch
          %340 = sbr.rel (%p338) target = $region40
        $region39: #{tpu_custom_call.1} parent=31 // pred_region
          %p341 = scmp.lt.s32.totalorder %s27, 1
          %s342 = scalar_select %p341, %s27, 1
          %s343 = smul.addr %s342, 8
          %s344 = scalar_lea.vmem %s1, %s343
        $region40: #{tpu_custom_call.1} parent=31 // pred_fallthru
          _
        // Predicated region
        $region41: #{tpu_custom_call.1} parent=31 // pred_check
          %p345 = pneg %p99
        $region42: #{tpu_custom_call.1} parent=31 // pred_check_branch
          %347 = sbr.rel (%p345) target = $region44
        $region43: #{tpu_custom_call.1} parent=31 // pred_region
          %p348 = scmp.lt.s32.totalorder %s27, 1
          %s349 = scalar_select %p348, %s27, 1
          %s350 = smul.addr %s349, 8
          %s351 = scalar_lea.vmem %s2, %s350
        $region44: #{tpu_custom_call.1} parent=31 // pred_fallthru
          _
        // Predicated region
        $region45: #{tpu_custom_call.1} parent=31 // pred_check
          %p352 = pneg %p125
        $region46: #{tpu_custom_call.1} parent=31 // pred_check_branch
          %354 = sbr.rel (%p352) target = $region48
        $region47: #{tpu_custom_call.1} parent=31 // pred_region
          %s355 = sand.u32 %s115, 1
          %s356 = scalar_lea.sflag [#allocation4], %s355
          %s357 = sand.u32 %s115, 1
          %s358 = smul.addr %s357, 8
          %s359 = scalar_lea.vmem [#allocation3], %s358
          %361 = vsyncadd %s356, 0
          %s362 = smul.addr %s27, 8
          %s363 = scalar_lea.hbm %s3, %s362
          %s365 = sshll.u32 %s363, 4
          %s366 = int_to_ptr.hbm [resolvable:$true] %s365
          %s367 = sshll.u32 %s359, 4
          %s368 = int_to_ptr.vmem [resolvable:$true] %s367
          %370 = dma.hbm_to_vmem [thread:$0]  %s366, 128, %s368, %s356
        $region48: #{tpu_custom_call.1} parent=31 // pred_fallthru
          _
      $region32: #{tpu_custom_call.1} parent=5 // pred_fallthru
        _
      %p371 = scmp.le.s32.totalorder 1, %s27
      %p372 = scmp.lt.s32.totalorder %s27, 3
      %p373 = pnand %p371, %p372
      %p374 = pneg %p373
      // Predicated region
      $region49: #{tpu_custom_call.1} parent=5 // pred_check
        _
      $region50: #{tpu_custom_call.1} parent=5 // pred_check_branch
        %376 = sbr.rel (%p373) target = $region52
      $region51: #{tpu_custom_call.1} parent=5 // pred_region
        %s377 = ssub.s32 %s27, 1
        %s378 = sand.u32 %s118, 1
        %s379 = scalar_lea.sflag [#allocation4], %s378
        %s380 = sand.u32 %s118, 1
        %s381 = smul.addr %s380, 8
        %s382 = scalar_lea.vmem [#allocation3], %s381
        // Predicated region
        $region53: #{tpu_custom_call.1} parent=51 // pred_check
          %p383 = pneg %p131
        $region54: #{tpu_custom_call.1} parent=51 // pred_check_branch
          %385 = sbr.rel (%p383) target = $region56
        $region55: #{tpu_custom_call.1} parent=51 // pred_region
          %387 = dma.done %s379, 128
        $region56: #{tpu_custom_call.1} parent=51 // pred_fallthru
          _
        // Predicated region
        $region57: #{tpu_custom_call.1} parent=51 // pred_check
          %p388 = pneg %p152
        $region58: #{tpu_custom_call.1} parent=51 // pred_check_branch
          %390 = sbr.rel (%p388) target = $region60
        $region59: #{tpu_custom_call.1} parent=51 // pred_region
          %392 = dma.done [#allocation7], 256
        $region60: #{tpu_custom_call.1} parent=51 // pred_fallthru
          _
        // Predicated region
        $region61: #{tpu_custom_call.1} parent=51 // pred_check
          %p393 = pneg %p173
        $region62: #{tpu_custom_call.1} parent=51 // pred_check_branch
          %395 = sbr.rel (%p393) target = $region64
        $region63: #{tpu_custom_call.1} parent=51 // pred_region
          %397 = dma.done [#allocation7], 256
        $region64: #{tpu_custom_call.1} parent=51 // pred_fallthru
          _
        // Predicated region
        $region65: #{tpu_custom_call.1} parent=51 // pred_check
          %p398 = pneg %p194
        $region66: #{tpu_custom_call.1} parent=51 // pred_check_branch
          %400 = sbr.rel (%p398) target = $region68
        $region67: #{tpu_custom_call.1} parent=51 // pred_region
          %402 = dma.done [#allocation10], 256
        $region68: #{tpu_custom_call.1} parent=51 // pred_fallthru
          _
        %p403 = scmp.lt.s32.totalorder %s32, 1
        %s404 = scalar_select %p403, %s32, 1
        %s405 = smul.addr %s404, 8
        %s406 = scalar_lea.vmem %s0, %s405
        %p407 = pneg %p53
        %p408 = pneg %p50
        %p409 = scmp.lt.s32.totalorder %s32, 1
        %s410 = scalar_select %p409, %s32, 1
        %s411 = smul.addr %s410, 8
        %s412 = scalar_lea.vmem %s1, %s411
        %p413 = pneg %p79
        %p414 = pneg %p76
        %p415 = scmp.lt.s32.totalorder %s32, 1
        %s416 = scalar_select %p415, %s32, 1
        %s417 = smul.addr %s416, 8
        %s418 = scalar_lea.vmem %s2, %s417
        %p419 = pneg %p105
        %p420 = pneg %p102
        %s421 = sand.u32 %s118, 1
        %s422 = scalar_lea.sflag [#allocation4], %s421
        %s423 = sand.u32 %s118, 1
        %s424 = smul.addr %s423, 8
        %s425 = scalar_lea.vmem [#allocation3], %s424
        %p426 = pneg %p131
        %p427 = pneg %p128
        %p428 = pneg %p152
        %p429 = pneg %p149
        %p430 = pneg %p173
        %p431 = pneg %p170
        %p432 = pneg %p194
        %p433 = pneg %p191
        %p434 = pneg %p215
        %p435 = pneg %p212
        %p436 = pneg %p241
        %p437 = pneg %p238
        %s438 = sand.u32 %s228, 1
        %s439 = scalar_lea.sflag [#allocation5], %s438
        %s440 = sand.u32 %s228, 1
        %s441 = smul.addr %s440, 8
        %s442 = scalar_lea.vmem [#allocation11], %s441
        %p443 = pneg %p267
        %p444 = pneg %p264
        %s445 = sand.u32 %s254, 1
        %s446 = scalar_lea.sflag [#allocation13], %s445
        %s447 = sand.u32 %s254, 1
        %s448 = smul.addr %s447, 8
        %s449 = scalar_lea.vmem [#allocation12], %s448
        %p450 = scmp.lt.s32.totalorder %s32, 1
        %s451 = scalar_select %p450, %s32, 1
        %s452 = smul.addr %s451, 8
        %s453 = scalar_lea.vmem %s0, %s452
        %p454 = scmp.lt.s32.totalorder %s32, 1
        %s455 = scalar_select %p454, %s32, 1
        %s456 = smul.addr %s455, 8
        %s457 = scalar_lea.vmem %s1, %s456
        %p458 = scmp.lt.s32.totalorder %s32, 1
        %s459 = scalar_select %p458, %s32, 1
        %s460 = smul.addr %s459, 8
        %s461 = scalar_lea.vmem %s2, %s460
        %v463 = vld [vmem:[%s457] sm:$0xff]
        %v464 = vld [vmem:[%s461] sm:$0xff]
        %v465 = vld [vmem:[%s382] sm:$0xff]
        %v466 = vld [vmem:[%s453] sm:$0xff]
        %v467 = vpack.c.bf16 %v463, %v463
        %v468 = vld [vmem:[#allocation6] sm:$0xf]
        %v469 = vld [vmem:[#allocation6 + $0x4] sm:$0xf]
        %v470 = vld [vmem:[#allocation6 + $0x8] sm:$0xf]
        %v471 = vld [vmem:[#allocation6 + $0xc] sm:$0xf]
        %v476 = vunpack.c.l.b16 %v468
        %v477 = vunpack.c.l.b16 %v469
        %v478 = vunpack.c.l.b16 %v470
        %v479 = vunpack.c.l.b16 %v471
        %v480 = vpack.c.b16 %v477, %v476
        %v481 = vpack.c.b16 %v479, %v478
        %vm484 = vcmask 261120
        %v486 = vsel %vm484, %v467, 0
        %488 = vmatpush.bf16.msra.mxu0 0
        %489 = vmatpush.bf16.msra.mxu0 0
        %490 = vmatpush.bf16.msra.mxu0 0
        %491 = vmatpush.bf16.msra.mxu0 0
        %492 = vmatpush.bf16.msra.mxu0 0
        %493 = vmatpush.bf16.msra.mxu0 0
        %494 = vmatpush.bf16.msra.mxu0 %v481
        %495 = vmatpush.bf16.msra.mxu0 %v480
        %496 = vmatmul.bf16.gmra.mxu0 %v486
        %v497 = vpop.f32.mrf.mxu0
        %v498 = vadd.f32 0.0, %v497
        %v499 = vpop.f32.mrf.mxu0
        %500 = vdwg.mxu0
        %v501 = vpack.c.bf16 %v464, %v464
        %v502 = vld [vmem:[#allocation8] sm:$0xf]
        %v503 = vld [vmem:[#allocation8 + $0x4] sm:$0xf]
        %v504 = vld [vmem:[#allocation8 + $0x8] sm:$0xf]
        %v505 = vld [vmem:[#allocation8 + $0xc] sm:$0xf]
        %v510 = vunpack.c.l.b16 %v502
        %v511 = vunpack.c.l.b16 %v503
        %v512 = vunpack.c.l.b16 %v504
        %v513 = vunpack.c.l.b16 %v505
        %v514 = vpack.c.b16 %v511, %v510
        %v515 = vpack.c.b16 %v513, %v512
        %v519 = vsel %vm484, %v501, 0
        %521 = vmatpush.bf16.msra.mxu0 0
        %522 = vmatpush.bf16.msra.mxu0 0
        %523 = vmatpush.bf16.msra.mxu0 0
        %524 = vmatpush.bf16.msra.mxu0 0
        %525 = vmatpush.bf16.msra.mxu0 0
        %526 = vmatpush.bf16.msra.mxu0 0
        %527 = vmatpush.bf16.msra.mxu0 %v515
        %528 = vmatpush.bf16.msra.mxu0 %v514
        %529 = vmatmul.bf16.gmra.mxu0 %v519
        %v530 = vpop.f32.mrf.mxu0
        %v531 = vadd.f32 0.0, %v530
        %v532 = vpop.f32.mrf.mxu0
        %533 = vdwg.mxu0
        %v534 = vpack.c.bf16 %v465, %v465
        %v535 = vld [vmem:[#allocation9] sm:$0xf]
        %v536 = vld [vmem:[#allocation9 + $0x4] sm:$0xf]
        %v537 = vld [vmem:[#allocation9 + $0x8] sm:$0xf]
        %v538 = vld [vmem:[#allocation9 + $0xc] sm:$0xf]
        %v543 = vunpack.c.l.b16 %v535
        %v544 = vunpack.c.l.b16 %v536
        %v545 = vunpack.c.l.b16 %v537
        %v546 = vunpack.c.l.b16 %v538
        %v547 = vpack.c.b16 %v544, %v543
        %v548 = vpack.c.b16 %v546, %v545
        %v552 = vsel %vm484, %v534, 0
        %554 = vmatpush.bf16.msra.mxu0 0
        %555 = vmatpush.bf16.msra.mxu0 0
        %556 = vmatpush.bf16.msra.mxu0 0
        %557 = vmatpush.bf16.msra.mxu0 0
        %558 = vmatpush.bf16.msra.mxu0 0
        %559 = vmatpush.bf16.msra.mxu0 0
        %560 = vmatpush.bf16.msra.mxu0 %v548
        %561 = vmatpush.bf16.msra.mxu0 %v547
        %562 = vmatmul.bf16.gmra.mxu0 %v552
        %v563 = vpop.f32.mrf.mxu0
        %v564 = vadd.f32 0.0, %v563
        %v565 = vpop.f32.mrf.mxu0
        %566 = vdwg.mxu0
        %vm567 = vcmask 64512
        %568 = vst.msk [vmem:[#allocation2] sm:$0xff] %vm567, %v564
        %570 = vrot.lane.b32.xlu0 %v564, 120
        %v571 = vpop.permute.xlu0 %570
        %573 = vst.msk [vmem:[#allocation2 + $0x8] sm:$0xff] %vm567, %v571
        %574 = vrot.lane.b32.xlu0 %v564, 112
        %v575 = vpop.permute.xlu0 %574
        %577 = vst.msk [vmem:[#allocation2 + $0x10] sm:$0xff] %vm567, %v575
        %578 = vrot.lane.b32.xlu0 %v564, 104
        %v579 = vpop.permute.xlu0 %578
        %581 = vst.msk [vmem:[#allocation2 + $0x18] sm:$0xff] %vm567, %v579
        %582 = vrot.lane.b32.xlu0 %v564, 96
        %v583 = vpop.permute.xlu0 %582
        %585 = vst.msk [vmem:[#allocation2 + $0x20] sm:$0xff] %vm567, %v583
        %586 = vrot.lane.b32.xlu0 %v564, 88
        %v587 = vpop.permute.xlu0 %586
        %589 = vst.msk [vmem:[#allocation2 + $0x28] sm:$0xff] %vm567, %v587
        %590 = vrot.lane.b32.xlu0 %v564, 80
        %v591 = vpop.permute.xlu0 %590
        %593 = vst.msk [vmem:[#allocation2 + $0x30] sm:$0xff] %vm567, %v591
        %594 = vrot.lane.b32.xlu0 %v564, 72
        %v595 = vpop.permute.xlu0 %594
        %597 = vst.msk [vmem:[#allocation2 + $0x38] sm:$0xff] %vm567, %v595
        %v598 = vpack.c.bf16 %v498, %v498
        %v599 = vpack.c.bf16 %v531, %v531
        %v601 = vsel %vm567, %v598, 0
        %v604 = vsel %vm567, %v599, 0
        %606 = vmatpush.bf16.xpose.msra.mxu0 0
        %607 = vmatpush.bf16.xpose.msra.mxu0 0
        %608 = vmatpush.bf16.xpose.msra.mxu0 0
        %609 = vmatpush.bf16.xpose.msra.mxu0 0
        %610 = vmatpush.bf16.xpose.msra.mxu0 0
        %611 = vmatpush.bf16.xpose.msra.mxu0 0
        %612 = vmatpush.bf16.xpose.msra.mxu0 0
        %613 = vmatpush.bf16.xpose.msra.mxu0 %v604
        %614 = vmatmul.bf16.gmra.mxu0 %v601
        %v615 = vpop.f32.mrf.mxu0
        %v616 = vadd.f32 0.0, %v615
        %v617 = vpop.f32.mrf.mxu0
        %618 = vdwg.mxu0
        %v619 = vmul.f32 %v616, 0.35355338
        %v620 = vadd.f32 %v619, %v466
        %v621 = vsel %vm567, %v620, -inf
        %622 = vmax.xlane.f32.xlu0 %v621
        %v623 = vpop.xlane.xlu0 %622
        %v624 = vsub.f32 %v620, %v623
        %v625 = vmul.f32 %v624, 1.442695
        %v626 = vpow.pop %v625
        %v627 = vsel %vm567, %v626, 0.0
        %628 = vadd.xlane.f32.xlu0 %v627
        %v629 = vpop.xlane.xlu0 %628
        %v630 = vrcp.pop %v629
        %v631 = vmul.f32 %v626, %v630
        %v632 = vld [vmem:[#allocation2] ss:$8 sm:$0xf]
        %v633 = vld [vmem:[#allocation2] ss:$8 sm:$0xf0]
        %v634 = vor.u32 %v632, %v633
        %v635 = vpack.c.bf16 %v631, %v631
        %v636 = vpack.c.bf16 %v634, %v634
        %v638 = vsel %vm567, %v635, 0
        %vm640 = vcmask 1043456
        %v642 = vsel %vm640, %v636, 0
        %644 = vmatpush.bf16.msra.mxu0 0
        %645 = vmatpush.bf16.msra.mxu0 0
        %646 = vmatpush.bf16.msra.mxu0 0
        %647 = vmatpush.bf16.msra.mxu0 0
        %648 = vmatpush.bf16.msra.mxu0 0
        %649 = vmatpush.bf16.msra.mxu0 0
        %650 = vmatpush.bf16.msra.mxu0 0
        %651 = vmatpush.bf16.msra.mxu0 %v642
        %652 = vmatmul.bf16.gmra.mxu0 %v638
        %v653 = vpop.f32.mrf.mxu0
        %v654 = vadd.f32 0.0, %v653
        %v655 = vpop.f32.mrf.mxu0
        %656 = vdwg.mxu0
        %v658 = vunpack.c.l.b16 %v598
        %v659 = vpack.c.b16 %v658, %v658
        %660 = vrot.lane.b32.xlu0 %v659, 120
        %v661 = vpop.permute.xlu0 %660
        %v663 = vunpack.c.l.b16 %v599
        %v664 = vpack.c.b16 %v663, %v663
        %665 = vrot.lane.b32.xlu0 %v664, 120
        %v666 = vpop.permute.xlu0 %665
        %v668 = vsel %vm567, %v661, 0
        %v671 = vsel %vm567, %v666, 0
        %673 = vmatpush.bf16.xpose.msra.mxu0 0
        %674 = vmatpush.bf16.xpose.msra.mxu0 0
        %675 = vmatpush.bf16.xpose.msra.mxu0 0
        %676 = vmatpush.bf16.xpose.msra.mxu0 0
        %677 = vmatpush.bf16.xpose.msra.mxu0 0
        %678 = vmatpush.bf16.xpose.msra.mxu0 0
        %679 = vmatpush.bf16.xpose.msra.mxu0 0
        %680 = vmatpush.bf16.xpose.msra.mxu0 %v671
        %681 = vmatmul.bf16.gmra.mxu0 %v668
        %v682 = vpop.f32.mrf.mxu0
        %v683 = vadd.f32 0.0, %v682
        %v684 = vpop.f32.mrf.mxu0
        %685 = vdwg.mxu0
        %v686 = vmul.f32 %v683, 0.35355338
        %v687 = vadd.f32 %v686, %v466
        %v688 = vsel %vm567, %v687, -inf
        %689 = vmax.xlane.f32.xlu0 %v688
        %v690 = vpop.xlane.xlu0 %689
        %v691 = vsub.f32 %v687, %v690
        %v692 = vmul.f32 %v691, 1.442695
        %v693 = vpow.pop %v692
        %v694 = vsel %vm567, %v693, 0.0
        %695 = vadd.xlane.f32.xlu0 %v694
        %v696 = vpop.xlane.xlu0 %695
        %v697 = vrcp.pop %v696
        %v698 = vmul.f32 %v693, %v697
        %s699 = scalar_lea.vmem [#allocation2], 1
        %v700 = vld [vmem:[%s699] ss:$8 sm:$0xf]
        %v701 = vld [vmem:[%s699] ss:$8 sm:$0xf0]
        %v702 = vor.u32 %v700, %v701
        %v703 = vpack.c.bf16 %v698, %v698
        %v704 = vpack.c.bf16 %v702, %v702
        %v706 = vsel %vm567, %v703, 0
        %v709 = vsel %vm640, %v704, 0
        %711 = vmatpush.bf16.msra.mxu0 0
        %712 = vmatpush.bf16.msra.mxu0 0
        %713 = vmatpush.bf16.msra.mxu0 0
        %714 = vmatpush.bf16.msra.mxu0 0
        %715 = vmatpush.bf16.msra.mxu0 0
        %716 = vmatpush.bf16.msra.mxu0 0
        %717 = vmatpush.bf16.msra.mxu0 0
        %718 = vmatpush.bf16.msra.mxu0 %v709
        %719 = vmatmul.bf16.gmra.mxu0 %v706
        %v720 = vpop.f32.mrf.mxu0
        %v721 = vadd.f32 0.0, %v720
        %v722 = vpop.f32.mrf.mxu0
        %723 = vdwg.mxu0
        %724 = vrot.lane.b32.xlu0 %v659, 112
        %v725 = vpop.permute.xlu0 %724
        %726 = vrot.lane.b32.xlu0 %v664, 112
        %v727 = vpop.permute.xlu0 %726
        %v729 = vsel %vm567, %v725, 0
        %v732 = vsel %vm567, %v727, 0
        %734 = vmatpush.bf16.xpose.msra.mxu0 0
        %735 = vmatpush.bf16.xpose.msra.mxu0 0
        %736 = vmatpush.bf16.xpose.msra.mxu0 0
        %737 = vmatpush.bf16.xpose.msra.mxu0 0
        %738 = vmatpush.bf16.xpose.msra.mxu0 0
        %739 = vmatpush.bf16.xpose.msra.mxu0 0
        %740 = vmatpush.bf16.xpose.msra.mxu0 0
        %741 = vmatpush.bf16.xpose.msra.mxu0 %v732
        %742 = vmatmul.bf16.gmra.mxu0 %v729
        %v743 = vpop.f32.mrf.mxu0
        %v744 = vadd.f32 0.0, %v743
        %v745 = vpop.f32.mrf.mxu0
        %746 = vdwg.mxu0
        %v747 = vmul.f32 %v744, 0.35355338
        %v748 = vadd.f32 %v747, %v466
        %v749 = vsel %vm567, %v748, -inf
        %750 = vmax.xlane.f32.xlu0 %v749
        %v751 = vpop.xlane.xlu0 %750
        %v752 = vsub.f32 %v748, %v751
        %v753 = vmul.f32 %v752, 1.442695
        %v754 = vpow.pop %v753
        %v755 = vsel %vm567, %v754, 0.0
        %756 = vadd.xlane.f32.xlu0 %v755
        %v757 = vpop.xlane.xlu0 %756
        %v758 = vrcp.pop %v757
        %v759 = vmul.f32 %v754, %v758
        %s760 = scalar_lea.vmem [#allocation2], 2
        %v761 = vld [vmem:[%s760] ss:$8 sm:$0xf]
        %v762 = vld [vmem:[%s760] ss:$8 sm:$0xf0]
        %v763 = vor.u32 %v761, %v762
        %v764 = vpack.c.bf16 %v759, %v759
        %v765 = vpack.c.bf16 %v763, %v763
        %v767 = vsel %vm567, %v764, 0
        %v770 = vsel %vm640, %v765, 0
        %772 = vmatpush.bf16.msra.mxu0 0
        %773 = vmatpush.bf16.msra.mxu0 0
        %774 = vmatpush.bf16.msra.mxu0 0
        %775 = vmatpush.bf16.msra.mxu0 0
        %776 = vmatpush.bf16.msra.mxu0 0
        %777 = vmatpush.bf16.msra.mxu0 0
        %778 = vmatpush.bf16.msra.mxu0 0
        %779 = vmatpush.bf16.msra.mxu0 %v770
        %780 = vmatmul.bf16.gmra.mxu0 %v767
        %v781 = vpop.f32.mrf.mxu0
        %v782 = vadd.f32 0.0, %v781
        %v783 = vpop.f32.mrf.mxu0
        %784 = vdwg.mxu0
        %785 = vrot.lane.b32.xlu0 %v659, 104
        %v786 = vpop.permute.xlu0 %785
        %787 = vrot.lane.b32.xlu0 %v664, 104
        %v788 = vpop.permute.xlu0 %787
        %v790 = vsel %vm567, %v786, 0
        %v793 = vsel %vm567, %v788, 0
        %795 = vmatpush.bf16.xpose.msra.mxu0 0
        %796 = vmatpush.bf16.xpose.msra.mxu0 0
        %797 = vmatpush.bf16.xpose.msra.mxu0 0
        %798 = vmatpush.bf16.xpose.msra.mxu0 0
        %799 = vmatpush.bf16.xpose.msra.mxu0 0
        %800 = vmatpush.bf16.xpose.msra.mxu0 0
        %801 = vmatpush.bf16.xpose.msra.mxu0 0
        %802 = vmatpush.bf16.xpose.msra.mxu0 %v793
        %803 = vmatmul.bf16.gmra.mxu0 %v790
        %v804 = vpop.f32.mrf.mxu0
        %v805 = vadd.f32 0.0, %v804
        %v806 = vpop.f32.mrf.mxu0
        %807 = vdwg.mxu0
        %v808 = vmul.f32 %v805, 0.35355338
        %v809 = vadd.f32 %v808, %v466
        %v810 = vsel %vm567, %v809, -inf
        %811 = vmax.xlane.f32.xlu0 %v810
        %v812 = vpop.xlane.xlu0 %811
        %v813 = vsub.f32 %v809, %v812
        %v814 = vmul.f32 %v813, 1.442695
        %v815 = vpow.pop %v814
        %v816 = vsel %vm567, %v815, 0.0
        %817 = vadd.xlane.f32.xlu0 %v816
        %v818 = vpop.xlane.xlu0 %817
        %v819 = vrcp.pop %v818
        %v820 = vmul.f32 %v815, %v819
        %s821 = scalar_lea.vmem [#allocation2], 3
        %v822 = vld [vmem:[%s821] ss:$8 sm:$0xf]
        %v823 = vld [vmem:[%s821] ss:$8 sm:$0xf0]
        %v824 = vor.u32 %v822, %v823
        %v825 = vpack.c.bf16 %v820, %v820
        %v826 = vpack.c.bf16 %v824, %v824
        %v828 = vsel %vm567, %v825, 0
        %v831 = vsel %vm640, %v826, 0
        %833 = vmatpush.bf16.msra.mxu0 0
        %834 = vmatpush.bf16.msra.mxu0 0
        %835 = vmatpush.bf16.msra.mxu0 0
        %836 = vmatpush.bf16.msra.mxu0 0
        %837 = vmatpush.bf16.msra.mxu0 0
        %838 = vmatpush.bf16.msra.mxu0 0
        %839 = vmatpush.bf16.msra.mxu0 0
        %840 = vmatpush.bf16.msra.mxu0 %v831
        %841 = vmatmul.bf16.gmra.mxu0 %v828
        %v842 = vpop.f32.mrf.mxu0
        %v843 = vadd.f32 0.0, %v842
        %v844 = vpop.f32.mrf.mxu0
        %845 = vdwg.mxu0
        %846 = vrot.lane.b32.xlu0 %v659, 96
        %v847 = vpop.permute.xlu0 %846
        %848 = vrot.lane.b32.xlu0 %v664, 96
        %v849 = vpop.permute.xlu0 %848
        %v851 = vsel %vm567, %v847, 0
        %v854 = vsel %vm567, %v849, 0
        %856 = vmatpush.bf16.xpose.msra.mxu0 0
        %857 = vmatpush.bf16.xpose.msra.mxu0 0
        %858 = vmatpush.bf16.xpose.msra.mxu0 0
        %859 = vmatpush.bf16.xpose.msra.mxu0 0
        %860 = vmatpush.bf16.xpose.msra.mxu0 0
        %861 = vmatpush.bf16.xpose.msra.mxu0 0
        %862 = vmatpush.bf16.xpose.msra.mxu0 0
        %863 = vmatpush.bf16.xpose.msra.mxu0 %v854
        %864 = vmatmul.bf16.gmra.mxu0 %v851
        %v865 = vpop.f32.mrf.mxu0
        %v866 = vadd.f32 0.0, %v865
        %v867 = vpop.f32.mrf.mxu0
        %868 = vdwg.mxu0
        %v869 = vmul.f32 %v866, 0.35355338
        %v870 = vadd.f32 %v869, %v466
        %v871 = vsel %vm567, %v870, -inf
        %872 = vmax.xlane.f32.xlu0 %v871
        %v873 = vpop.xlane.xlu0 %872
        %v874 = vsub.f32 %v870, %v873
        %v875 = vmul.f32 %v874, 1.442695
        %v876 = vpow.pop %v875
        %v877 = vsel %vm567, %v876, 0.0
        %878 = vadd.xlane.f32.xlu0 %v877
        %v879 = vpop.xlane.xlu0 %878
        %v880 = vrcp.pop %v879
        %v881 = vmul.f32 %v876, %v880
        %s882 = scalar_lea.vmem [#allocation2], 4
        %v883 = vld [vmem:[%s882] ss:$8 sm:$0xf]
        %v884 = vld [vmem:[%s882] ss:$8 sm:$0xf0]
        %v885 = vor.u32 %v883, %v884
        %v886 = vpack.c.bf16 %v881, %v881
        %v887 = vpack.c.bf16 %v885, %v885
        %v889 = vsel %vm567, %v886, 0
        %v892 = vsel %vm640, %v887, 0
        %894 = vmatpush.bf16.msra.mxu0 0
        %895 = vmatpush.bf16.msra.mxu0 0
        %896 = vmatpush.bf16.msra.mxu0 0
        %897 = vmatpush.bf16.msra.mxu0 0
        %898 = vmatpush.bf16.msra.mxu0 0
        %899 = vmatpush.bf16.msra.mxu0 0
        %900 = vmatpush.bf16.msra.mxu0 0
        %901 = vmatpush.bf16.msra.mxu0 %v892
        %902 = vmatmul.bf16.gmra.mxu0 %v889
        %v903 = vpop.f32.mrf.mxu0
        %v904 = vadd.f32 0.0, %v903
        %v905 = vpop.f32.mrf.mxu0
        %906 = vdwg.mxu0
        %907 = vrot.lane.b32.xlu0 %v659, 88
        %v908 = vpop.permute.xlu0 %907
        %909 = vrot.lane.b32.xlu0 %v664, 88
        %v910 = vpop.permute.xlu0 %909
        %v912 = vsel %vm567, %v908, 0
        %v915 = vsel %vm567, %v910, 0
        %917 = vmatpush.bf16.xpose.msra.mxu0 0
        %918 = vmatpush.bf16.xpose.msra.mxu0 0
        %919 = vmatpush.bf16.xpose.msra.mxu0 0
        %920 = vmatpush.bf16.xpose.msra.mxu0 0
        %921 = vmatpush.bf16.xpose.msra.mxu0 0
        %922 = vmatpush.bf16.xpose.msra.mxu0 0
        %923 = vmatpush.bf16.xpose.msra.mxu0 0
        %924 = vmatpush.bf16.xpose.msra.mxu0 %v915
        %925 = vmatmul.bf16.gmra.mxu0 %v912
        %v926 = vpop.f32.mrf.mxu0
        %v927 = vadd.f32 0.0, %v926
        %v928 = vpop.f32.mrf.mxu0
        %929 = vdwg.mxu0
        %v930 = vmul.f32 %v927, 0.35355338
        %v931 = vadd.f32 %v930, %v466
        %v932 = vsel %vm567, %v931, -inf
        %933 = vmax.xlane.f32.xlu0 %v932
        %v934 = vpop.xlane.xlu0 %933
        %v935 = vsub.f32 %v931, %v934
        %v936 = vmul.f32 %v935, 1.442695
        %v937 = vpow.pop %v936
        %v938 = vsel %vm567, %v937, 0.0
        %939 = vadd.xlane.f32.xlu0 %v938
        %v940 = vpop.xlane.xlu0 %939
        %v941 = vrcp.pop %v940
        %v942 = vmul.f32 %v937, %v941
        %s943 = scalar_lea.vmem [#allocation2], 5
        %v944 = vld [vmem:[%s943] ss:$8 sm:$0xf]
        %v945 = vld [vmem:[%s943] ss:$8 sm:$0xf0]
        %v946 = vor.u32 %v944, %v945
        %v947 = vpack.c.bf16 %v942, %v942
        %v948 = vpack.c.bf16 %v946, %v946
        %v950 = vsel %vm567, %v947, 0
        %v953 = vsel %vm640, %v948, 0
        %955 = vmatpush.bf16.msra.mxu0 0
        %956 = vmatpush.bf16.msra.mxu0 0
        %957 = vmatpush.bf16.msra.mxu0 0
        %958 = vmatpush.bf16.msra.mxu0 0
        %959 = vmatpush.bf16.msra.mxu0 0
        %960 = vmatpush.bf16.msra.mxu0 0
        %961 = vmatpush.bf16.msra.mxu0 0
        %962 = vmatpush.bf16.msra.mxu0 %v953
        %963 = vmatmul.bf16.gmra.mxu0 %v950
        %v964 = vpop.f32.mrf.mxu0
        %v965 = vadd.f32 0.0, %v964
        %v966 = vpop.f32.mrf.mxu0
        %967 = vdwg.mxu0
        %968 = vrot.lane.b32.xlu0 %v659, 80
        %v969 = vpop.permute.xlu0 %968
        %970 = vrot.lane.b32.xlu0 %v664, 80
        %v971 = vpop.permute.xlu0 %970
        %v973 = vsel %vm567, %v969, 0
        %v976 = vsel %vm567, %v971, 0
        %978 = vmatpush.bf16.xpose.msra.mxu0 0
        %979 = vmatpush.bf16.xpose.msra.mxu0 0
        %980 = vmatpush.bf16.xpose.msra.mxu0 0
        %981 = vmatpush.bf16.xpose.msra.mxu0 0
        %982 = vmatpush.bf16.xpose.msra.mxu0 0
        %983 = vmatpush.bf16.xpose.msra.mxu0 0
        %984 = vmatpush.bf16.xpose.msra.mxu0 0
        %985 = vmatpush.bf16.xpose.msra.mxu0 %v976
        %986 = vmatmul.bf16.gmra.mxu0 %v973
        %v987 = vpop.f32.mrf.mxu0
        %v988 = vadd.f32 0.0, %v987
        %v989 = vpop.f32.mrf.mxu0
        %990 = vdwg.mxu0
        %v991 = vmul.f32 %v988, 0.35355338
        %v992 = vadd.f32 %v991, %v466
        %v993 = vsel %vm567, %v992, -inf
        %994 = vmax.xlane.f32.xlu0 %v993
        %v995 = vpop.xlane.xlu0 %994
        %v996 = vsub.f32 %v992, %v995
        %v997 = vmul.f32 %v996, 1.442695
        %v998 = vpow.pop %v997
        %v999 = vsel %vm567, %v998, 0.0
        %1000 = vadd.xlane.f32.xlu0 %v999
        %v1001 = vpop.xlane.xlu0 %1000
        %v1002 = vrcp.pop %v1001
        %v1003 = vmul.f32 %v998, %v1002
        %s1004 = scalar_lea.vmem [#allocation2], 6
        %v1005 = vld [vmem:[%s1004] ss:$8 sm:$0xf]
        %v1006 = vld [vmem:[%s1004] ss:$8 sm:$0xf0]
        %v1007 = vor.u32 %v1005, %v1006
        %v1008 = vpack.c.bf16 %v1003, %v1003
        %v1009 = vpack.c.bf16 %v1007, %v1007
        %v1011 = vsel %vm567, %v1008, 0
        %v1014 = vsel %vm640, %v1009, 0
        %1016 = vmatpush.bf16.msra.mxu0 0
        %1017 = vmatpush.bf16.msra.mxu0 0
        %1018 = vmatpush.bf16.msra.mxu0 0
        %1019 = vmatpush.bf16.msra.mxu0 0
        %1020 = vmatpush.bf16.msra.mxu0 0
        %1021 = vmatpush.bf16.msra.mxu0 0
        %1022 = vmatpush.bf16.msra.mxu0 0
        %1023 = vmatpush.bf16.msra.mxu0 %v1014
        %1024 = vmatmul.bf16.gmra.mxu0 %v1011
        %v1025 = vpop.f32.mrf.mxu0
        %v1026 = vadd.f32 0.0, %v1025
        %v1027 = vpop.f32.mrf.mxu0
        %1028 = vdwg.mxu0
        %1029 = vrot.lane.b32.xlu0 %v659, 72
        %v1030 = vpop.permute.xlu0 %1029
        %1031 = vrot.lane.b32.xlu0 %v664, 72
        %v1032 = vpop.permute.xlu0 %1031
        %v1034 = vsel %vm567, %v1030, 0
        %v1037 = vsel %vm567, %v1032, 0
        %1039 = vmatpush.bf16.xpose.msra.mxu0 0
        %1040 = vmatpush.bf16.xpose.msra.mxu0 0
        %1041 = vmatpush.bf16.xpose.msra.mxu0 0
        %1042 = vmatpush.bf16.xpose.msra.mxu0 0
        %1043 = vmatpush.bf16.xpose.msra.mxu0 0
        %1044 = vmatpush.bf16.xpose.msra.mxu0 0
        %1045 = vmatpush.bf16.xpose.msra.mxu0 0
        %1046 = vmatpush.bf16.xpose.msra.mxu0 %v1037
        %1047 = vmatmul.bf16.gmra.mxu0 %v1034
        %v1048 = vpop.f32.mrf.mxu0
        %v1049 = vadd.f32 0.0, %v1048
        %v1050 = vpop.f32.mrf.mxu0
        %1051 = vdwg.mxu0
        %v1052 = vmul.f32 %v1049, 0.35355338
        %v1053 = vadd.f32 %v1052, %v466
        %v1054 = vsel %vm567, %v1053, -inf
        %1055 = vmax.xlane.f32.xlu0 %v1054
        %v1056 = vpop.xlane.xlu0 %1055
        %v1057 = vsub.f32 %v1053, %v1056
        %v1058 = vmul.f32 %v1057, 1.442695
        %v1059 = vpow.pop %v1058
        %v1060 = vsel %vm567, %v1059, 0.0
        %1061 = vadd.xlane.f32.xlu0 %v1060
        %v1062 = vpop.xlane.xlu0 %1061
        %v1063 = vrcp.pop %v1062
        %v1064 = vmul.f32 %v1059, %v1063
        %s1065 = scalar_lea.vmem [#allocation2], 7
        %v1066 = vld [vmem:[%s1065] ss:$8 sm:$0xf]
        %v1067 = vld [vmem:[%s1065] ss:$8 sm:$0xf0]
        %v1068 = vor.u32 %v1066, %v1067
        %v1069 = vpack.c.bf16 %v1064, %v1064
        %v1070 = vpack.c.bf16 %v1068, %v1068
        %v1072 = vsel %vm567, %v1069, 0
        %v1075 = vsel %vm640, %v1070, 0
        %1077 = vmatpush.bf16.msra.mxu0 0
        %1078 = vmatpush.bf16.msra.mxu0 0
        %1079 = vmatpush.bf16.msra.mxu0 0
        %1080 = vmatpush.bf16.msra.mxu0 0
        %1081 = vmatpush.bf16.msra.mxu0 0
        %1082 = vmatpush.bf16.msra.mxu0 0
        %1083 = vmatpush.bf16.msra.mxu0 0
        %1084 = vmatpush.bf16.msra.mxu0 %v1075
        %1085 = vmatmul.bf16.gmra.mxu0 %v1072
        %v1086 = vpop.f32.mrf.mxu0
        %v1087 = vadd.f32 0.0, %v1086
        %v1088 = vpop.f32.mrf.mxu0
        %1089 = vdwg.mxu0
        %1091 = vrot.lane.b32.xlu0 %v698, 8
        %v1092 = vpop.permute.xlu0 %1091
        %1095 = vrot.lane.b32.xlu0 %v759, 16
        %v1096 = vpop.permute.xlu0 %1095
        %1099 = vrot.lane.b32.xlu0 %v820, 24
        %v1100 = vpop.permute.xlu0 %1099
        %1103 = vrot.lane.b32.xlu0 %v881, 32
        %v1104 = vpop.permute.xlu0 %1103
        %1107 = vrot.lane.b32.xlu0 %v942, 40
        %v1108 = vpop.permute.xlu0 %1107
        %1111 = vrot.lane.b32.xlu0 %v1003, 48
        %v1112 = vpop.permute.xlu0 %1111
        %1115 = vrot.lane.b32.xlu0 %v1064, 56
        %v1116 = vpop.permute.xlu0 %1115
        %v1118 = vsel %vm567, %v631, %v1092
        %vm1119 = vcmask 130048
        %v1120 = vsel %vm1119, %v1118, %v1096
        %vm1121 = vcmask 195584
        %v1122 = vsel %vm1121, %v1120, %v1100
        %v1123 = vsel %vm484, %v1122, %v1104
        %vm1124 = vcmask 326656
        %v1125 = vsel %vm1124, %v1123, %v1108
        %vm1126 = vcmask 392192
        %v1127 = vsel %vm1126, %v1125, %v1112
        %vm1128 = vcmask 457728
        %v1129 = vsel %vm1128, %v1127, %v1116
        %vm1130 = vcmask 523264
        %1131 = vst.msk [vmem:[%s449] sm:$0xff] %vm1130, %v1129
        %1133 = vrot.lane.b32.xlu0 %v721, 8
        %v1134 = vpop.permute.xlu0 %1133
        %1137 = vrot.lane.b32.xlu0 %v782, 16
        %v1138 = vpop.permute.xlu0 %1137
        %1141 = vrot.lane.b32.xlu0 %v843, 24
        %v1142 = vpop.permute.xlu0 %1141
        %1145 = vrot.lane.b32.xlu0 %v904, 32
        %v1146 = vpop.permute.xlu0 %1145
        %1149 = vrot.lane.b32.xlu0 %v965, 40
        %v1150 = vpop.permute.xlu0 %1149
        %1153 = vrot.lane.b32.xlu0 %v1026, 48
        %v1154 = vpop.permute.xlu0 %1153
        %1157 = vrot.lane.b32.xlu0 %v1087, 56
        %v1158 = vpop.permute.xlu0 %1157
        %v1160 = vsel %vm567, %v654, %v1134
        %v1161 = vsel %vm1119, %v1160, %v1138
        %v1162 = vsel %vm1121, %v1161, %v1142
        %v1163 = vsel %vm484, %v1162, %v1146
        %v1164 = vsel %vm1124, %v1163, %v1150
        %v1165 = vsel %vm1126, %v1164, %v1154
        %v1166 = vsel %vm1128, %v1165, %v1158
        %v1167 = vpack.c.bf16 %v1166, %v1166
        %v1168 = vld [vmem:[%s7] sm:$0xf]
        %v1169 = vld [vmem:[%s7 + $0x4] sm:$0xf]
        %v1170 = vld [vmem:[%s7 + $0x8] sm:$0xf]
        %v1171 = vld [vmem:[%s7 + $0xc] sm:$0xf]
        %v1172 = vld [vmem:[%s7 + $0x10] sm:$0xf]
        %v1173 = vld [vmem:[%s7 + $0x14] sm:$0xf]
        %v1174 = vld [vmem:[%s7 + $0x18] sm:$0xf]
        %v1175 = vld [vmem:[%s7 + $0x1c] sm:$0xf]
        %v1184 = vunpack.c.l.b16 %v1168
        %v1185 = vunpack.c.l.b16 %v1169
        %v1186 = vunpack.c.l.b16 %v1170
        %v1187 = vunpack.c.l.b16 %v1171
        %v1188 = vunpack.c.l.b16 %v1172
        %v1189 = vunpack.c.l.b16 %v1173
        %v1190 = vunpack.c.l.b16 %v1174
        %v1191 = vunpack.c.l.b16 %v1175
        %v1192 = vpack.c.b16 %v1185, %v1184
        %v1193 = vpack.c.b16 %v1187, %v1186
        %v1194 = vpack.c.b16 %v1189, %v1188
        %v1195 = vpack.c.b16 %v1191, %v1190
        %v1201 = vsel %vm1130, %v1167, 0
        %1203 = vmatpush.bf16.msra.mxu0 0
        %1204 = vmatpush.bf16.msra.mxu0 0
        %1205 = vmatpush.bf16.msra.mxu0 0
        %1206 = vmatpush.bf16.msra.mxu0 0
        %1207 = vmatpush.bf16.msra.mxu0 %v1195
        %1208 = vmatpush.bf16.msra.mxu0 %v1194
        %1209 = vmatpush.bf16.msra.mxu0 %v1193
        %1210 = vmatpush.bf16.msra.mxu0 %v1192
        %1211 = vmatmul.bf16.gmra.mxu0 %v1201
        %v1212 = vpop.f32.mrf.mxu0
        %v1213 = vadd.f32 %v463, %v1212
        %v1214 = vpop.f32.mrf.mxu0
        %1215 = vdwg.mxu0
        %v1216 = vsel %vm484, %v1213, 0.0
        %1217 = vadd.xlane.f32.xlu0 %v1216
        %v1218 = vpop.xlane.xlu0 %1217
        %v1219 = vrcp.pop 32.0
        %v1220 = vmul.f32 32.0, %v1219
        %v1221 = vsub.f32 1.0, %v1220
        %v1222 = vmul.f32 %v1219, %v1221
        %v1223 = vadd.f32 %v1219, %v1222
        %vm1224 = vweird.f32 %v1219
        %v1225 = vsel %vm1224, %v1219, %v1223
        %v1226 = vmul.f32 %v1218, %v1225
        %v1227 = vsub.f32 %v1213, %v1226
        %v1228 = vmul.f32 %v1227, %v1227
        %v1229 = vsel %vm484, %v1228, 0.0
        %1230 = vadd.xlane.f32.xlu0 %v1229
        %v1231 = vpop.xlane.xlu0 %1230
        %v1232 = vmul.f32 %v1231, %v1225
        %v1233 = vadd.f32 %v1232, 1e-05
        %v1234 = vrsqrt.pop %v1233
        %v1235 = vmul.f32 %v1234, %v1233
        %v1236 = vmul.f32 %v1235, %v1234
        %v1237 = vmul.f32 0.5, %v1236
        %v1238 = vsub.f32 1.5, %v1237
        %v1239 = vmul.f32 %v1234, %v1238
        %vm1240 = vweird.f32 %v1233
        %vm1241 = vweird.f32 %v1234
        %vm1242 = vmor %vm1240, %vm1241
        %v1243 = vsel %vm1242, %v1234, %v1239
        %v1244 = vmul.f32 %v1227, %v1243
        %1245 = vst.msk [vmem:[%s442] sm:$0xff] %vm484, %v1244
        %s1246 = sand.u32 %s228, 1
        %s1247 = scalar_lea.sflag [#allocation5], %s1246
        %s1248 = sand.u32 %s228, 1
        %s1249 = smul.addr %s1248, 8
        %s1250 = scalar_lea.vmem [#allocation11], %s1249
        %s1251 = sand.u32 %s254, 1
        %s1252 = scalar_lea.sflag [#allocation13], %s1251
        %s1253 = sand.u32 %s254, 1
        %s1254 = smul.addr %s1253, 8
        %s1255 = scalar_lea.vmem [#allocation12], %s1254
        // Predicated region
        $region69: #{tpu_custom_call.1} parent=51 // pred_check
          %p1256 = pneg %p238
        $region70: #{tpu_custom_call.1} parent=51 // pred_check_branch
          %1258 = sbr.rel (%p1256) target = $region72
        $region71: #{tpu_custom_call.1} parent=51 // pred_region
          %1260 = vsyncadd %s1247, 0
          %s1261 = smul.addr %s32, 8
          %s1262 = scalar_lea.hbm %s8, %s1261
          %s1264 = sshll.u32 %s1250, 4
          %s1265 = int_to_ptr.vmem [resolvable:$true] %s1264
          %s1266 = sshll.u32 %s1262, 4
          %s1267 = int_to_ptr.hbm [resolvable:$true] %s1266
          %1269 = dma.vmem_to_hbm [thread:$0]  %s1265, 128, %s1267, %s1247
        $region72: #{tpu_custom_call.1} parent=51 // pred_fallthru
          _
        // Predicated region
        $region73: #{tpu_custom_call.1} parent=51 // pred_check
          %p1270 = pneg %p264
        $region74: #{tpu_custom_call.1} parent=51 // pred_check_branch
          %1272 = sbr.rel (%p1270) target = $region76
        $region75: #{tpu_custom_call.1} parent=51 // pred_region
          %1274 = vsyncadd %s1252, 0
          %s1275 = smul.addr %s32, 8
          %s1276 = scalar_lea.hbm %s9, %s1275
          %s1278 = sshll.u32 %s1255, 4
          %s1279 = int_to_ptr.vmem [resolvable:$true] %s1278
          %s1280 = sshll.u32 %s1276, 4
          %s1281 = int_to_ptr.hbm [resolvable:$true] %s1280
          %1283 = dma.vmem_to_hbm [thread:$0]  %s1279, 128, %s1281, %s1252
        $region76: #{tpu_custom_call.1} parent=51 // pred_fallthru
          _
      $region52: #{tpu_custom_call.1} parent=5 // pred_fallthru
        _
      %p1284 = scmp.le.s32.totalorder 2, %s27
      // Predicated region
      $region77: #{tpu_custom_call.1} parent=5 // pred_check
        %p1285 = pneg %p1284
      $region78: #{tpu_custom_call.1} parent=5 // pred_check_branch
        %1287 = sbr.rel (%p1285) target = $region80
      $region79: #{tpu_custom_call.1} parent=5 // pred_region
        %s1288 = ssub.s32 %s27, 2
        // Predicated region
        $region81: #{tpu_custom_call.1} parent=79 // pred_check
          %p1289 = pneg %p244
        $region82: #{tpu_custom_call.1} parent=79 // pred_check_branch
          %1291 = sbr.rel (%p1289) target = $region84
        $region83: #{tpu_custom_call.1} parent=79 // pred_region
          %s1292 = sand.u32 %s229, 1
          %s1293 = scalar_lea.sflag [#allocation5], %s1292
          %s1294 = sand.u32 %s229, 1
          %s1295 = smul.addr %s1294, 8
          %s1296 = scalar_lea.vmem [#allocation11], %s1295
          %1298 = dma.done %s1293, 128
        $region84: #{tpu_custom_call.1} parent=79 // pred_fallthru
          _
        // Predicated region
        $region85: #{tpu_custom_call.1} parent=79 // pred_check
          %p1299 = pneg %p270
        $region86: #{tpu_custom_call.1} parent=79 // pred_check_branch
          %1301 = sbr.rel (%p1299) target = $region88
        $region87: #{tpu_custom_call.1} parent=79 // pred_region
          %s1302 = sand.u32 %s255, 1
          %s1303 = scalar_lea.sflag [#allocation13], %s1302
          %s1304 = sand.u32 %s255, 1
          %s1305 = smul.addr %s1304, 8
          %s1306 = scalar_lea.vmem [#allocation12], %s1305
          %1308 = dma.done %s1303, 128
        $region88: #{tpu_custom_call.1} parent=79 // pred_fallthru
          _
      $region80: #{tpu_custom_call.1} parent=5 // pred_fallthru
        _
    $region6: #{tpu_custom_call.1} parent=1 // loop_footer
      %s31 = sadd.s32 1, %s27
    $region7: #{tpu_custom_call.1} parent=1 // loop_footer_branch
      %26 = sbr.rel target = $region3
    $region8: #{tpu_custom_call.1} parent=1 // loop_exit
      _
    %1309 = vsyncpa [#allocation4], 1
    %s1310 = scalar_lea.sflag [#allocation4], 1
    %1311 = vsyncpa %s1310, 1
    %1312 = vsyncpa [#allocation7], 1
    %1313 = vsyncpa [#allocation10], 1
    %1314 = vsyncpa [#allocation5], 1
    %s1315 = scalar_lea.sflag [#allocation5], 1
    %1316 = vsyncpa %s1315, 1
    %1317 = vsyncpa [#allocation13], 1
    %s1318 = scalar_lea.sflag [#allocation13], 1
    %1319 = vsyncpa %s1318, 1

</llo_original>
